<compile_context>
chip_gen: v6e
topology: v6e:2x2x1
jax: 0.10.0
libtpu: 0.0.40
codegen_flags: <defaults>
</compile_context>

<pallas_src>
import jax
import jax.numpy as jnp
from jax.experimental import pallas as pl
from jax.experimental.pallas import tpu as pltpu


_LANE = 128
_VMEM_BUDGET_BYTES = 40 << 20          # conservative vs. v7x's 64 MiB physical VMEM
_COL_TILE_CANDIDATES = (2048, 1024, 512, 256, 128)


# --------------------------------------------------------------------------- #
# Kernel
# --------------------------------------------------------------------------- #
def _make_gate_kernel(activations, rows, matmul_dtype):
    """Fused kernel for n_gates gates stacked along M sharing (x, hidden)."""
    n_gates = len(activations)

    def kernel(w_ref, u_ref, b_ref, x_ref, h_ref, *out_refs):
        # In-kernel bf16 cast (rides under DMA/MXU); f32 accumulation on the MXU.
        x = x_ref[...].astype(matmul_dtype)
        h = h_ref[...].astype(matmul_dtype)
        # Two-dot form: no [x;h] scratch, no sublane-offset stores.
        pre = jnp.dot(w_ref[...], x, preferred_element_type=jnp.float32)
        pre = pre + jnp.dot(u_ref[...], h, preferred_element_type=jnp.float32)
        # Bias-add + activation in f32; cast only at the final (lane-dense) store.
        pre = pre + b_ref[...].astype(jnp.float32)
        for g in range(n_gates):
            blk = pre if n_gates == 1 else pre[g * rows:(g + 1) * rows, :]
            out_refs[g][...] = activations[g](blk).astype(out_refs[g].dtype)

    return kernel


# --------------------------------------------------------------------------- #
# VMEM budgeting / tiling
# --------------------------------------------------------------------------- #
def _vmem_bytes(n_gates, rows, tn, in_bytes, out_bytes, mm_bytes, resident_bufs):
    w_u = 2 * resident_bufs * n_gates * rows * rows * mm_bytes   # W + U
    bias = 2 * n_gates * rows * tn * 4                           # double-buffered
    xh = 2 * 2 * rows * tn * in_bytes                            # x + hidden tiles
    out = 2 * n_gates * rows * tn * out_bytes                    # output tiles
    pre = n_gates * rows * tn * 4                                # f32 intermediate
    return w_u + bias + xh + out + pre


def _pick_col_tile(cols, vmem_of_tn, budget, min_col_tiles=2):
    cands = [t for t in _COL_TILE_CANDIDATES if cols % t == 0]
    fitting = [t for t in cands if vmem_of_tn(t) <= budget]
    if not fitting:
        return None
    # Prefer the largest tile that still yields a multi-step grid (pipelining /
    # 2-TC sharding on v7x); otherwise the largest fitting tile.
    multi = [t for t in fitting if cols // t >= min_col_tiles]
    return multi[0] if multi else fitting[0]


# --------------------------------------------------------------------------- #
# Plain-XLA fallback (cols not lane-dense or rows too big for the VMEM budget)
# --------------------------------------------------------------------------- #
def _xla_forward(gates, x, hidden, out_dtype):
    outs = []
    xf = x.astype(jnp.float32)
    hf = hidden.astype(jnp.float32)
    for (W, U, bias, act) in gates:
        pre = (jnp.einsum("ij,bjc->bic", W.astype(jnp.float32), xf)
               + jnp.einsum("ij,bjc->bic", U.astype(jnp.float32), hf)
               + bias.astype(jnp.float32))
        outs.append(act(pre).astype(out_dtype))
    return tuple(outs)


# --------------------------------------------------------------------------- #
# Public entry points
# --------------------------------------------------------------------------- #
def mat_gru_gates_batched(gates, x, hidden, *,
                          matmul_dtype=jnp.bfloat16,
                          out_dtype=None,
                          vmem_budget_bytes=_VMEM_BUDGET_BYTES):
    """Fused forward for one or more MatGRUGates sharing the same (x, hidden).

    gates:   sequence of (W, U, bias, activation) with W, U: (rows, rows) and
             bias: (rows, cols).
    x, hidden: (B, rows, cols) in native layout (no host re-layout needed).
    Returns a tuple of (B, rows, cols) arrays, one per gate.
    """
    B, rows, cols = x.shape
    assert hidden.shape == x.shape
    n_gates = len(gates)
    for (W, U, bias, _) in gates:
        assert W.shape == (rows, rows) and U.shape == (rows, rows)
        assert bias.shape == (rows, cols)

    out_dtype = x.dtype if out_dtype is None else out_dtype
    activations = tuple(act for (_, _, _, act) in gates)

    # Lane-dense design needs cols % 128 == 0 (unmasked vst on the output);
    # otherwise fall back to XLA rather than silently taking masked stores.
    if cols % _LANE != 0:
        return _xla_forward(gates, x, hidden, out_dtype)

    in_b = jnp.dtype(x.dtype).itemsize
    out_b = jnp.dtype(out_dtype).itemsize
    mm_b = jnp.dtype(matmul_dtype).itemsize

    def vmem_of(tn, resident_bufs=1):
        return _vmem_bytes(n_gates, rows, tn, in_b, out_b, mm_b, resident_bufs)

    tn = _pick_col_tile(cols, vmem_of, vmem_budget_bytes)
    if tn is None:
        # TODO(synk): very large `rows` needs a K-accumulating grid axis with an
        # f32 VMEM accumulator instead of fully-resident W/U; fall back for now.
        return _xla_forward(gates, x, hidden, out_dtype)

    # Parameter prep (one-time / hoistable): stack gates along M, cast to bf16.
    Ws = jnp.concatenate([W for (W, _, _, _) in gates], axis=0).astype(matmul_dtype)
    Us = jnp.concatenate([U for (_, U, _, _) in gates], axis=0).astype(matmul_dtype)
    bs = jnp.concatenate([b for (_, _, b, _) in gates], axis=0).astype(jnp.float32)

    grid = (B, cols // tn)     # both axes independent -> megacore / 2-TC shardable

    kernel = _make_gate_kernel(activations, rows, matmul_dtype)

    cost = pl.CostEstimate(
        flops=4 * n_gates * rows * rows * cols * B,          # two matmuls per gate
        transcendentals=n_gates * rows * cols * B,
        bytes_accessed=(Ws.size * mm_b + Us.size * mm_b + bs.size * 4
                        + 2 * x.size * in_b + n_gates * x.size * out_b),
    )

    # Explicit scoped-VMEM limit: above v5e's 16 MiB default when needed, below
    # the ~48 MiB target for v7x (64 MiB physical). Budget assumes 2x-buffered
    # weights so the Buffered(1) fallback path below is also covered.
    vmem_limit = int(min(max(2 * vmem_of(tn, resident_bufs=2) + (8 << 20), 32 << 20),
                         48 << 20))

    out_shapes = tuple(jax.ShapeDtypeStruct((B, rows, cols), out_dtype)
                       for _ in range(n_gates))

    def run(resident_mode):
        res_kw = {} if resident_mode is None else {"pipeline_mode": resident_mode}
        in_specs = [
            # Resident stacked weights (constant index_map).
            pl.BlockSpec((n_gates * rows, rows), lambda b, j: (0, 0), **res_kw),
            pl.BlockSpec((n_gates * rows, rows), lambda b, j: (0, 0), **res_kw),
            # Bias tile: independent of the batch axis -> not re-fetched per b.
            pl.BlockSpec((n_gates * rows, tn), lambda b, j: (0, j)),
            # x / hidden in native (B, rows, cols) layout; batch dim squeezed.
            pl.BlockSpec((None, rows, tn), lambda b, j: (b, 0, j)),
            pl.BlockSpec((None, rows, tn), lambda b, j: (b, 0, j)),
        ]
        out_specs = tuple(pl.BlockSpec((None, rows, tn), lambda b, j: (b, 0, j))
                          for _ in range(n_gates))
        return pl.pallas_call(
            kernel,
            out_shape=out_shapes,
            grid_spec=pltpu.PrefetchScalarGridSpec(
                num_scalar_prefetch=0,
                grid=grid,
                in_specs=in_specs,
                out_specs=out_specs,
            ),
            compiler_params=pltpu.CompilerParams(
                dimension_semantics=("parallel", "parallel"),
                vmem_limit_bytes=vmem_limit,
            ),
            cost_estimate=cost,
        )(Ws, Us, bs, x, hidden)

    try:
        # Single-buffer the resident weight blocks (constant index_map).
        outs = run(pl.Buffered(1))
    except Exception:
        # JAX versions without pipeline_mode support on pallas_call BlockSpecs:
        # default double-buffered resident weights (covered by vmem_limit).
        outs = run(None)

    return tuple(outs)


def mat_gru_gate_batched(W, U, bias, x, hidden, activation=jax.nn.sigmoid, **kwargs):
    """Batched single-gate forward: (B, rows, cols) -> (B, rows, cols)."""
    return mat_gru_gates_batched([(W, U, bias, activation)], x, hidden, **kwargs)[0]


def mat_gru_gate(W, U, bias, x, hidden, activation=jax.nn.sigmoid, **kwargs):
    """Single-sample forward matching the PyTorch module signature (x: (rows, cols))."""
    return mat_gru_gate_batched(W, U, bias, x[None], hidden[None],
                                activation=activation, **kwargs)[0]


def _xavier_uniform(key, shape, dtype=jnp.float32):
    fan_in, fan_out = shape[1], shape[0]
    limit = (6.0 / (fan_in + fan_out)) ** 0.5
    return jax.random.uniform(key, shape, dtype=dtype, minval=-limit, maxval=limit)


# --------------------------------------------------------------------------- #
# Demo / self-test
# --------------------------------------------------------------------------- #
if __name__ == "__main__":
    rows, cols, B = 32, 256, 2     # grid = (B=2, cols//128=2): multi-step, even

    key = jax.random.PRNGKey(0)
    k_w0, k_u0, k_w1, k_u1, k_b1, k_x, k_h = jax.random.split(key, 7)

    # Gate 0 matches MatGRUGate.reset_parameters: xavier W/U, zero bias (sigmoid).
    W0 = _xavier_uniform(k_w0, (rows, rows))
    U0 = _xavier_uniform(k_u0, (rows, rows))
    b0 = jnp.zeros((rows, cols), dtype=jnp.float32)
    # Gate 1: tanh (htilda-style) with a non-zero bias to exercise the bias add.
    W1 = _xavier_uniform(k_w1, (rows, rows))
    U1 = _xavier_uniform(k_u1, (rows, rows))
    b1 = 0.1 * jax.random.normal(k_b1, (rows, cols), dtype=jnp.float32)

    x = jax.random.normal(k_x, (B, rows, cols), dtype=jnp.float32)
    hidden = jax.random.normal(k_h, (B, rows, cols), dtype=jnp.float32)

    # Fused call: both gates share (x, hidden) -> x/hidden read from HBM once.
    out0, out1 = mat_gru_gates_batched(
        [(W0, U0, b0, jax.nn.sigmoid), (W1, U1, b1, jnp.tanh)], x, hidden)
    # Single-sample call matching the PyTorch forward signature.
    out_single = mat_gru_gate(W0, U0, b0, x[0], hidden[0], activation=jax.nn.sigmoid)
    # Non-lane-dense shape exercises the documented XLA fallback path.
    out_small = mat_gru_gate_batched(W0, U0, b0[:, :48], x[:, :, :48],
                                     hidden[:, :, :48])
    jax.block_until_ready((out0, out1, out_single, out_small))

    # Plain-JAX f32 reference (same math as the PyTorch forward).
    def ref_pre(W, U, b, xx, hh):
        return (jnp.einsum("ij,bjc->bic", W, xx)
                + jnp.einsum("ij,bjc->bic", U, hh) + b)

    ref0 = jax.nn.sigmoid(ref_pre(W0, U0, b0, x, hidden))
    ref1 = jnp.tanh(ref_pre(W1, U1, b1, x, hidden))
    ref_small = jax.nn.sigmoid(ref_pre(W0, U0, b0[:, :48],
                                       x[:, :, :48], hidden[:, :, :48]))

    # Tolerance accounts for bf16 matmul inputs (f32 MXU accumulation).
    assert out0.shape == (B, rows, cols) and out1.shape == (B, rows, cols)
    assert jnp.allclose(out0, ref0, atol=2e-2, rtol=2e-2), "sigmoid gate mismatch"
    assert jnp.allclose(out1, ref1, atol=2e-2, rtol=2e-2), "tanh gate mismatch"
    assert jnp.allclose(out_single, ref0[0], atol=2e-2, rtol=2e-2), "single-sample mismatch"
    assert jnp.allclose(out_small, ref_small, atol=2e-2, rtol=2e-2), "fallback mismatch"

    print("KERNEL_OK")
</pallas_src>

<mosaic_0001>
module attributes {stable_mosaic.version = 11 : i64} {
  func.func @kernel(%arg0: i32, %arg1: i32, %arg2: memref<64x32xbf16, #tpu.memory_space<vmem>>, %arg3: memref<64x32xbf16, #tpu.memory_space<vmem>>, %arg4: memref<64x128xf32, #tpu.memory_space<vmem>>, %arg5: memref<1x32x128xf32, #tpu.memory_space<vmem>>, %arg6: memref<1x32x128xf32, #tpu.memory_space<vmem>>, %arg7: memref<1x32x128xf32, #tpu.memory_space<vmem>>, %arg8: memref<1x32x128xf32, #tpu.memory_space<vmem>>) attributes {dimension_semantics = [#tpu.dimension_semantics<parallel>, #tpu.dimension_semantics<parallel>], iteration_bounds = array<i64: 2, 2>, scalar_prefetch = 0 : i64, scratch_operands = 0 : i64, tpu.core_type = #tpu.core_type<tc>, window_params = [{pipeline_mode = #tpu.pipeline_mode<synchronous>, transform_indices = @transform_0, window_bounds = array<i64: 64, 32>}, {pipeline_mode = #tpu.pipeline_mode<synchronous>, transform_indices = @transform_1, window_bounds = array<i64: 64, 32>}, {transform_indices = @transform_2, window_bounds = array<i64: 64, 128>}, {transform_indices = @transform_3, window_bounds = array<i64: 1, 32, 128>}, {transform_indices = @transform_4, window_bounds = array<i64: 1, 32, 128>}, {transform_indices = @transform_5, window_bounds = array<i64: 1, 32, 128>}, {transform_indices = @transform_6, window_bounds = array<i64: 1, 32, 128>}]} {
    %c0 = arith.constant 0 : index
    %c0_0 = arith.constant 0 : index
    %c0_1 = arith.constant 0 : index
    %0 = vector.load %arg5[%c0, %c0_0, %c0_1] : memref<1x32x128xf32, #tpu.memory_space<vmem>>, vector<1x32x128xf32>
    %1 = vector.shape_cast %0 : vector<1x32x128xf32> to vector<32x128xf32>
    %2 = arith.truncf %1 : vector<32x128xf32> to vector<32x128xbf16>
    %c0_2 = arith.constant 0 : index
    %c0_3 = arith.constant 0 : index
    %c0_4 = arith.constant 0 : index
    %3 = vector.load %arg6[%c0_2, %c0_3, %c0_4] : memref<1x32x128xf32, #tpu.memory_space<vmem>>, vector<1x32x128xf32>
    %4 = vector.shape_cast %3 : vector<1x32x128xf32> to vector<32x128xf32>
    %5 = arith.truncf %4 : vector<32x128xf32> to vector<32x128xbf16>
    %c0_5 = arith.constant 0 : index
    %c0_6 = arith.constant 0 : index
    %6 = vector.load %arg2[%c0_5, %c0_6] : memref<64x32xbf16, #tpu.memory_space<vmem>>, vector<64x32xbf16>
    %cst = arith.constant dense<0.000000e+00> : vector<64x128xf32>
    %7 = tpu.matmul %6, %2, %cst {dimension_numbers = #tpu.dot_dimension_numbers<[1], [0], [0], [1], [0, 0, 1, 1], [], []>} : vector<64x32xbf16>, vector<32x128xbf16>, vector<64x128xf32> -> vector<64x128xf32>
    %c0_7 = arith.constant 0 : index
    %c0_8 = arith.constant 0 : index
    %8 = vector.load %arg3[%c0_7, %c0_8] : memref<64x32xbf16, #tpu.memory_space<vmem>>, vector<64x32xbf16>
    %cst_9 = arith.constant dense<0.000000e+00> : vector<64x128xf32>
    %9 = tpu.matmul %8, %5, %cst_9 {dimension_numbers = #tpu.dot_dimension_numbers<[1], [0], [0], [1], [0, 0, 1, 1], [], []>} : vector<64x32xbf16>, vector<32x128xbf16>, vector<64x128xf32> -> vector<64x128xf32>
    %10 = arith.addf %7, %9 : vector<64x128xf32>
    %c0_10 = arith.constant 0 : index
    %c0_11 = arith.constant 0 : index
    %11 = vector.load %arg4[%c0_10, %c0_11] : memref<64x128xf32, #tpu.memory_space<vmem>>, vector<64x128xf32>
    %12 = arith.addf %10, %11 : vector<64x128xf32>
    %13 = vector.extract_strided_slice %12 {offsets = [0, 0], sizes = [32, 128], strides = [1, 1]} : vector<64x128xf32> to vector<32x128xf32>
    %14 = arith.negf %13 : vector<32x128xf32>
    %15 = math.exp %14 : vector<32x128xf32>
    %cst_12 = arith.constant 1.000000e+00 : f32
    %16 = vector.broadcast %cst_12 : f32 to vector<32x128xf32>
    %17 = arith.addf %16, %15 : vector<32x128xf32>
    %18 = arith.divf %16, %17 : vector<32x128xf32>
    %c0_13 = arith.constant 0 : index
    %c0_14 = arith.constant 0 : index
    %c0_15 = arith.constant 0 : index
    %19 = vector.load %arg7[%c0_13, %c0_14, %c0_15] : memref<1x32x128xf32, #tpu.memory_space<vmem>>, vector<1x32x128xf32>
    %20 = vector.shape_cast %19 : vector<1x32x128xf32> to vector<32x128xf32>
    %21 = vector.shape_cast %18 : vector<32x128xf32> to vector<1x32x128xf32>
    tpu.vector_store %arg7[%c0_13, %c0_14, %c0_15], %21 {strides = array<i32>} : memref<1x32x128xf32, #tpu.memory_space<vmem>>, vector<1x32x128xf32>,
    %22 = vector.extract_strided_slice %12 {offsets = [32, 0], sizes = [32, 128], strides = [1, 1]} : vector<64x128xf32> to vector<32x128xf32>
    %23 = math.tanh %22 : vector<32x128xf32>
    %c0_16 = arith.constant 0 : index
    %c0_17 = arith.constant 0 : index
    %c0_18 = arith.constant 0 : index
    %24 = vector.load %arg8[%c0_16, %c0_17, %c0_18] : memref<1x32x128xf32, #tpu.memory_space<vmem>>, vector<1x32x128xf32>
    %25 = vector.shape_cast %24 : vector<1x32x128xf32> to vector<32x128xf32>
    %26 = vector.shape_cast %23 : vector<32x128xf32> to vector<1x32x128xf32>
    tpu.vector_store %arg8[%c0_16, %c0_17, %c0_18], %26 {strides = array<i32>} : memref<1x32x128xf32, #tpu.memory_space<vmem>>, vector<1x32x128xf32>,
    return
  }
  func.func @transform_0(%arg0: i32, %arg1: i32) -> (i32, i32) {
    %c0_i32 = arith.constant 0 : i32
    %c0_i32_0 = arith.constant 0 : i32
    %c0_i32_1 = arith.constant 0 : i32
    return %c0_i32, %c0_i32_0 : i32, i32
  }
  func.func @transform_1(%arg0: i32, %arg1: i32) -> (i32, i32) {
    %c0_i32 = arith.constant 0 : i32
    %c0_i32_0 = arith.constant 0 : i32
    %c0_i32_1 = arith.constant 0 : i32
    return %c0_i32, %c0_i32_0 : i32, i32
  }
  func.func @transform_2(%arg0: i32, %arg1: i32) -> (i32, i32) {
    %c0_i32 = arith.constant 0 : i32
    %c0_i32_0 = arith.constant 0 : i32
    return %c0_i32, %arg1 : i32, i32
  }
  func.func @transform_3(%arg0: i32, %arg1: i32) -> (i32, i32, i32) {
    %c0_i32 = arith.constant 0 : i32
    %c0_i32_0 = arith.constant 0 : i32
    return %arg0, %c0_i32, %arg1 : i32, i32, i32
  }
  func.func @transform_4(%arg0: i32, %arg1: i32) -> (i32, i32, i32) {
    %c0_i32 = arith.constant 0 : i32
    %c0_i32_0 = arith.constant 0 : i32
    return %arg0, %c0_i32, %arg1 : i32, i32, i32
  }
  func.func @transform_5(%arg0: i32, %arg1: i32) -> (i32, i32, i32) {
    %c0_i32 = arith.constant 0 : i32
    %c0_i32_0 = arith.constant 0 : i32
    return %arg0, %c0_i32, %arg1 : i32, i32, i32
  }
  func.func @transform_6(%arg0: i32, %arg1: i32) -> (i32, i32, i32) {
    %c0_i32 = arith.constant 0 : i32
    %c0_i32_0 = arith.constant 0 : i32
    return %arg0, %c0_i32, %arg1 : i32, i32, i32
  }
}

module attributes {stable_mosaic.version = 11 : i64} {
  func.func @kernel(%arg0: i32, %arg1: i32, %arg2: memref<64x32xbf16, #tpu.memory_space<vmem>>, %arg3: memref<64x32xbf16, #tpu.memory_space<vmem>>, %arg4: memref<64x128xf32, #tpu.memory_space<vmem>>, %arg5: memref<1x32x128xf32, #tpu.memory_space<vmem>>, %arg6: memref<1x32x128xf32, #tpu.memory_space<vmem>>, %arg7: memref<1x32x128xf32, #tpu.memory_space<vmem>>, %arg8: memref<1x32x128xf32, #tpu.memory_space<vmem>>) attributes {dimension_semantics = [#tpu.dimension_semantics<parallel>, #tpu.dimension_semantics<parallel>], iteration_bounds = array<i64: 2, 2>, scalar_prefetch = 0 : i64, scratch_operands = 0 : i64, tpu.core_type = #tpu.core_type<tc>, window_params = [{pipeline_mode = #tpu.pipeline_mode<synchronous>, transform_indices = @transform_0, window_bounds = array<i64: 64, 32>}, {pipeline_mode = #tpu.pipeline_mode<synchronous>, transform_indices = @transform_1, window_bounds = array<i64: 64, 32>}, {transform_indices = @transform_2, window_bounds = array<i64: 64, 128>}, {transform_indices = @transform_3, window_bounds = array<i64: 1, 32, 128>}, {transform_indices = @transform_4, window_bounds = array<i64: 1, 32, 128>}, {transform_indices = @transform_5, window_bounds = array<i64: 1, 32, 128>}, {transform_indices = @transform_6, window_bounds = array<i64: 1, 32, 128>}]} {
    %c0 = arith.constant 0 : index
    %c0_0 = arith.constant 0 : index
    %c0_1 = arith.constant 0 : index
    %0 = vector.load %arg5[%c0, %c0_0, %c0_1] : memref<1x32x128xf32, #tpu.memory_space<vmem>>, vector<1x32x128xf32>
    %1 = vector.shape_cast %0 : vector<1x32x128xf32> to vector<32x128xf32>
    %2 = arith.truncf %1 : vector<32x128xf32> to vector<32x128xbf16>
    %c0_2 = arith.constant 0 : index
    %c0_3 = arith.constant 0 : index
    %c0_4 = arith.constant 0 : index
    %3 = vector.load %arg6[%c0_2, %c0_3, %c0_4] : memref<1x32x128xf32, #tpu.memory_space<vmem>>, vector<1x32x128xf32>
    %4 = vector.shape_cast %3 : vector<1x32x128xf32> to vector<32x128xf32>
    %5 = arith.truncf %4 : vector<32x128xf32> to vector<32x128xbf16>
    %c0_5 = arith.constant 0 : index
    %c0_6 = arith.constant 0 : index
    %6 = vector.load %arg2[%c0_5, %c0_6] : memref<64x32xbf16, #tpu.memory_space<vmem>>, vector<64x32xbf16>
    %cst = arith.constant dense<0.000000e+00> : vector<64x128xf32>
    %7 = tpu.matmul %6, %2, %cst {dimension_numbers = #tpu.dot_dimension_numbers<[1], [0], [0], [1], [0, 0, 1, 1], [], []>} : vector<64x32xbf16>, vector<32x128xbf16>, vector<64x128xf32> -> vector<64x128xf32>
    %c0_7 = arith.constant 0 : index
    %c0_8 = arith.constant 0 : index
    %8 = vector.load %arg3[%c0_7, %c0_8] : memref<64x32xbf16, #tpu.memory_space<vmem>>, vector<64x32xbf16>
    %cst_9 = arith.constant dense<0.000000e+00> : vector<64x128xf32>
    %9 = tpu.matmul %8, %5, %cst_9 {dimension_numbers = #tpu.dot_dimension_numbers<[1], [0], [0], [1], [0, 0, 1, 1], [], []>} : vector<64x32xbf16>, vector<32x128xbf16>, vector<64x128xf32> -> vector<64x128xf32>
    %10 = arith.addf %7, %9 : vector<64x128xf32>
    %c0_10 = arith.constant 0 : index
    %c0_11 = arith.constant 0 : index
    %11 = vector.load %arg4[%c0_10, %c0_11] : memref<64x128xf32, #tpu.memory_space<vmem>>, vector<64x128xf32>
    %12 = arith.addf %10, %11 : vector<64x128xf32>
    %13 = vector.extract_strided_slice %12 {offsets = [0, 0], sizes = [32, 128], strides = [1, 1]} : vector<64x128xf32> to vector<32x128xf32>
    %14 = arith.negf %13 : vector<32x128xf32>
    %15 = math.exp %14 : vector<32x128xf32>
    %cst_12 = arith.constant 1.000000e+00 : f32
    %16 = vector.broadcast %cst_12 : f32 to vector<32x128xf32>
    %17 = arith.addf %16, %15 : vector<32x128xf32>
    %18 = arith.divf %16, %17 : vector<32x128xf32>
    %c0_13 = arith.constant 0 : index
    %c0_14 = arith.constant 0 : index
    %c0_15 = arith.constant 0 : index
    %19 = vector.load %arg7[%c0_13, %c0_14, %c0_15] : memref<1x32x128xf32, #tpu.memory_space<vmem>>, vector<1x32x128xf32>
    %20 = vector.shape_cast %19 : vector<1x32x128xf32> to vector<32x128xf32>
    %21 = vector.shape_cast %18 : vector<32x128xf32> to vector<1x32x128xf32>
    tpu.vector_store %arg7[%c0_13, %c0_14, %c0_15], %21 {strides = array<i32>} : memref<1x32x128xf32, #tpu.memory_space<vmem>>, vector<1x32x128xf32>,
    %22 = vector.extract_strided_slice %12 {offsets = [32, 0], sizes = [32, 128], strides = [1, 1]} : vector<64x128xf32> to vector<32x128xf32>
    %23 = math.tanh %22 : vector<32x128xf32>
    %c0_16 = arith.constant 0 : index
    %c0_17 = arith.constant 0 : index
    %c0_18 = arith.constant 0 : index
    %24 = vector.load %arg8[%c0_16, %c0_17, %c0_18] : memref<1x32x128xf32, #tpu.memory_space<vmem>>, vector<1x32x128xf32>
    %25 = vector.shape_cast %24 : vector<1x32x128xf32> to vector<32x128xf32>
    %26 = vector.shape_cast %23 : vector<32x128xf32> to vector<1x32x128xf32>
    tpu.vector_store %arg8[%c0_16, %c0_17, %c0_18], %26 {strides = array<i32>} : memref<1x32x128xf32, #tpu.memory_space<vmem>>, vector<1x32x128xf32>,
    return
  }
  func.func @transform_0(%arg0: i32, %arg1: i32) -> (i32, i32) {
    %c0_i32 = arith.constant 0 : i32
    %c0_i32_0 = arith.constant 0 : i32
    %c0_i32_1 = arith.constant 0 : i32
    return %c0_i32, %c0_i32_0 : i32, i32
  }
  func.func @transform_1(%arg0: i32, %arg1: i32) -> (i32, i32) {
    %c0_i32 = arith.constant 0 : i32
    %c0_i32_0 = arith.constant 0 : i32
    %c0_i32_1 = arith.constant 0 : i32
    return %c0_i32, %c0_i32_0 : i32, i32
  }
  func.func @transform_2(%arg0: i32, %arg1: i32) -> (i32, i32) {
    %c0_i32 = arith.constant 0 : i32
    %c0_i32_0 = arith.constant 0 : i32
    return %c0_i32, %arg1 : i32, i32
  }
  func.func @transform_3(%arg0: i32, %arg1: i32) -> (i32, i32, i32) {
    %c0_i32 = arith.constant 0 : i32
    %c0_i32_0 = arith.constant 0 : i32
    return %arg0, %c0_i32, %arg1 : i32, i32, i32
  }
  func.func @transform_4(%arg0: i32, %arg1: i32) -> (i32, i32, i32) {
    %c0_i32 = arith.constant 0 : i32
    %c0_i32_0 = arith.constant 0 : i32
    return %arg0, %c0_i32, %arg1 : i32, i32, i32
  }
  func.func @transform_5(%arg0: i32, %arg1: i32) -> (i32, i32, i32) {
    %c0_i32 = arith.constant 0 : i32
    %c0_i32_0 = arith.constant 0 : i32
    return %arg0, %c0_i32, %arg1 : i32, i32, i32
  }
  func.func @transform_6(%arg0: i32, %arg1: i32) -> (i32, i32, i32) {
    %c0_i32 = arith.constant 0 : i32
    %c0_i32_0 = arith.constant 0 : i32
    return %arg0, %c0_i32, %arg1 : i32, i32, i32
  }
}

</mosaic_0001>

<llo_original>
// kernel: tpu_custom_call.1
$region0: #{tpu_custom_call.1}
  #allocation0 [shape = 'u32[]', space=smem, size = 0x4, offset = 0x4, fixed_abs, tag = 'smem constant byte address 0x4 - core index']
  #allocation1 [shape = 'u32[144,128]{1,0:T(1,128)}', space=vmem, size = 0x12000, scoped, tag = 'internal scratch']
  %s0 = inlined_call_operand.vmem [shape: bf16[64,32], index: 0, kind: input, shape index: {}]
  %s1 = inlined_call_operand.vmem [shape: bf16[64,32], index: 1, kind: input, shape index: {}]
  %s2 = inlined_call_operand.hbm [shape: f32[64,256], index: 2, kind: input, shape index: {}]
  %s3 = inlined_call_operand.hbm [shape: f32[2,32,256], index: 3, kind: input, shape index: {}]
  %s4 = inlined_call_operand.hbm [shape: f32[2,32,256], index: 4, kind: input, shape index: {}]
  %s5 = inlined_call_operand.hbm [shape: f32[2,32,256], index: 5, kind: output, shape index: {0}]
  %s6 = inlined_call_operand.hbm [shape: f32[2,32,256], index: 6, kind: output, shape index: {1}]
  %7 = xla_tuple %s5, %s6
  %s8 = sld [smem:[#allocation0]]
  $region73: #{tpu_custom_call.1} parent=0
    _
  %s10 = ssub.s32 1, %s8
  %s11 = scalar_select 0, %s10, %s8
  $region1: #{tpu_custom_call.1} parent=0
    #allocation2 [shape = 'u8[65536]{0}', space=vmem, size = 0x10000, scoped, tag = 'input window, operand 2']
    #allocation3 [shape = 's32[2]{0}', space=sflag, size = 0x8, scoped, tag = 'scoped memory for tpu_custom_call.1']
    #allocation4 [shape = 's32[2]{0}', space=sflag, size = 0x8, scoped, tag = 'scoped memory for tpu_custom_call.1']
    #allocation5 [shape = 'u8[32768]{0}', space=vmem, size = 0x8000, scoped, tag = 'input window, operand 3']
    #allocation6 [shape = 's32[2]{0}', space=sflag, size = 0x8, scoped, tag = 'scoped memory for tpu_custom_call.1']
    #allocation7 [shape = 'u8[32768]{0}', space=vmem, size = 0x8000, scoped, tag = 'input window, operand 4']
    #allocation8 [shape = 'u8[32768]{0}', space=vmem, size = 0x8000, scoped, tag = 'output window, operand 0']
    #allocation9 [shape = 'u8[32768]{0}', space=vmem, size = 0x8000, scoped, tag = 'output window, operand 1']
    #allocation10 [shape = 's32[2]{0}', space=sflag, size = 0x8, scoped, tag = 'scoped memory for tpu_custom_call.1']
    %12 = vsyncpa [#allocation3], 0
    %s13 = scalar_lea.sflag [#allocation3], 1
    %14 = vsyncpa %s13, 0
    %15 = vsyncpa [#allocation6], 0
    %s16 = scalar_lea.sflag [#allocation6], 1
    %17 = vsyncpa %s16, 0
    %18 = vsyncpa [#allocation4], 0
    %s19 = scalar_lea.sflag [#allocation4], 1
    %20 = vsyncpa %s19, 0
    %21 = vsyncpa [#allocation10], 0
    %s22 = scalar_lea.sflag [#allocation10], 1
    %23 = vsyncpa %s22, 0
    loop: start=0, step=1, limit=6
    $region2: #{tpu_custom_call.1} parent=1 // loop_pre_header
      _
    $region3: #{tpu_custom_call.1} parent=1 // loop_header
      %s25 = sphi 0, %s29
      %p26 = scmp.ge.s32.totalorder %s25, 6
      %s32 = sphi 0, %s44
      %s33 = sphi 0, %s40
      %s34 = sphi 0, %s32
      %s35 = sphi 0, %s33
      %s36 = sphi 0, %s34
      %s37 = sphi 0, %s35
      %s45 = sphi 0, %s45
      %s47 = sphi 0, %s45
      %s48 = sphi 0, %s47
      %s62 = sphi 0, %s48
      %s66 = sphi 0, %s66
      %s68 = sphi 0, %s66
      %s69 = sphi 0, %s68
      %s83 = sphi 0, %s69
      %s89 = sphi 0, %s91
      %s92 = sphi 0, %s89
      %s93 = sphi 0, %s92
      %s109 = sphi 0, %s93
      %s117 = sphi 0, %s119
      %s120 = sphi 0, %s117
      %s121 = sphi 0, %s120
      %s137 = sphi 0, %s121
      %s145 = sphi 0, %s147
      %s148 = sphi 0, %s145
      %s149 = sphi 0, %s148
      %s165 = sphi 0, %s149
      %s173 = sphi 0, %s175
      %s176 = sphi 0, %s173
      %s177 = sphi 0, %s176
      %s193 = sphi 0, %s177
      %s201 = sphi 0, %s203
      %s204 = sphi 0, %s201
      %s205 = sphi 0, %s204
      %s221 = sphi 0, %s205
    $region4: #{tpu_custom_call.1} parent=1 // loop_header_branch
      %28 = sbr.rel (%p26) target = $region8
    $region5: #{tpu_custom_call.1} parent=1 // loop_body
      %s30 = ssub.s32 %s25, 1
      %s31 = ssub.s32 %s25, 2
      %s38 = sadd.s32 1, %s33
      %p39 = scmp.ge.s32.totalorder %s38, 2
      %s40 = scalar_select %p39, 0, %s38
      %s41 = sadd.s32 1, %s32
      %s42 = scalar_select %p39, %s41, %s32
      %p43 = scmp.ge.s32.totalorder %s42, 2
      %s44 = scalar_select %p43, 0, %s42
      %s46 = sadd.s32 %s45, 1
      %p49 = scmp.eq.s32.totalorder %s25, 3
      %p50 = scmp.ne.s32.totalorder %s45, %s47
      %p51 = scmp.eq.s32.totalorder %s25, 0
      %p52 = por %p50, %p51
      %p53 = scmp.ne.s32.totalorder %s45, %s47
      %p54 = scmp.eq.s32.totalorder %s30, 3
      %p55 = por %p53, %p54
      %p56 = scmp.ne.s32.totalorder %s47, %s48
      %p57 = scmp.eq.s32.totalorder %s30, 0
      %p58 = por %p56, %p57
      %p59 = scmp.ne.s32.totalorder %s47, %s48
      %p60 = scmp.eq.s32.totalorder %s31, 3
      %p61 = por %p59, %p60
      %p63 = scmp.ne.s32.totalorder %s48, %s62
      %p64 = scmp.eq.s32.totalorder %s31, 0
      %p65 = por %p63, %p64
      %s67 = sadd.s32 %s66, 1
      %p70 = scmp.eq.s32.totalorder %s25, 3
      %p71 = scmp.ne.s32.totalorder %s66, %s68
      %p72 = scmp.eq.s32.totalorder %s25, 0
      %p73 = por %p71, %p72
      %p74 = scmp.ne.s32.totalorder %s66, %s68
      %p75 = scmp.eq.s32.totalorder %s30, 3
      %p76 = por %p74, %p75
      %p77 = scmp.ne.s32.totalorder %s68, %s69
      %p78 = scmp.eq.s32.totalorder %s30, 0
      %p79 = por %p77, %p78
      %p80 = scmp.ne.s32.totalorder %s68, %s69
      %p81 = scmp.eq.s32.totalorder %s31, 3
      %p82 = por %p80, %p81
      %p84 = scmp.ne.s32.totalorder %s69, %s83
      %p85 = scmp.eq.s32.totalorder %s31, 0
      %p86 = por %p84, %p85
      %s87 = ssub.s32 %s33, %s40
      %p88 = scmp.eq.s32.totalorder %s87, 0
      %s90 = sadd.s32 %s89, 1
      %s91 = scalar_select %p88, %s89, %s90
      %p94 = pneg %p88
      %p95 = scmp.eq.s32.totalorder %s25, 3
      %p96 = por %p94, %p95
      %p97 = scmp.ne.s32.totalorder %s89, %s92
      %p98 = scmp.eq.s32.totalorder %s25, 0
      %p99 = por %p97, %p98
      %p100 = scmp.ne.s32.totalorder %s89, %s92
      %p101 = scmp.eq.s32.totalorder %s30, 3
      %p102 = por %p100, %p101
      %p103 = scmp.ne.s32.totalorder %s92, %s93
      %p104 = scmp.eq.s32.totalorder %s30, 0
      %p105 = por %p103, %p104
      %p106 = scmp.ne.s32.totalorder %s92, %s93
      %p107 = scmp.eq.s32.totalorder %s31, 3
      %p108 = por %p106, %p107
      %p110 = scmp.ne.s32.totalorder %s93, %s109
      %p111 = scmp.eq.s32.totalorder %s31, 0
      %p112 = por %p110, %p111
      %s113 = ssub.s32 %s32, %s44
      %s114 = ssub.s32 %s33, %s40
      %s115 = sor.u32 %s113, %s114
      %p116 = scmp.eq.s32.totalorder %s115, 0
      %s118 = sadd.s32 %s117, 1
      %s119 = scalar_select %p116, %s117, %s118
      %p122 = pneg %p116
      %p123 = scmp.eq.s32.totalorder %s25, 3
      %p124 = por %p122, %p123
      %p125 = scmp.ne.s32.totalorder %s117, %s120
      %p126 = scmp.eq.s32.totalorder %s25, 0
      %p127 = por %p125, %p126
      %p128 = scmp.ne.s32.totalorder %s117, %s120
      %p129 = scmp.eq.s32.totalorder %s30, 3
      %p130 = por %p128, %p129
      %p131 = scmp.ne.s32.totalorder %s120, %s121
      %p132 = scmp.eq.s32.totalorder %s30, 0
      %p133 = por %p131, %p132
      %p134 = scmp.ne.s32.totalorder %s120, %s121
      %p135 = scmp.eq.s32.totalorder %s31, 3
      %p136 = por %p134, %p135
      %p138 = scmp.ne.s32.totalorder %s121, %s137
      %p139 = scmp.eq.s32.totalorder %s31, 0
      %p140 = por %p138, %p139
      %s141 = ssub.s32 %s32, %s44
      %s142 = ssub.s32 %s33, %s40
      %s143 = sor.u32 %s141, %s142
      %p144 = scmp.eq.s32.totalorder %s143, 0
      %s146 = sadd.s32 %s145, 1
      %s147 = scalar_select %p144, %s145, %s146
      %p150 = pneg %p144
      %p151 = scmp.eq.s32.totalorder %s25, 3
      %p152 = por %p150, %p151
      %p153 = scmp.ne.s32.totalorder %s145, %s148
      %p154 = scmp.eq.s32.totalorder %s25, 0
      %p155 = por %p153, %p154
      %p156 = scmp.ne.s32.totalorder %s145, %s148
      %p157 = scmp.eq.s32.totalorder %s30, 3
      %p158 = por %p156, %p157
      %p159 = scmp.ne.s32.totalorder %s148, %s149
      %p160 = scmp.eq.s32.totalorder %s30, 0
      %p161 = por %p159, %p160
      %p162 = scmp.ne.s32.totalorder %s148, %s149
      %p163 = scmp.eq.s32.totalorder %s31, 3
      %p164 = por %p162, %p163
      %p166 = scmp.ne.s32.totalorder %s149, %s165
      %p167 = scmp.eq.s32.totalorder %s31, 0
      %p168 = por %p166, %p167
      %s169 = ssub.s32 %s32, %s44
      %s170 = ssub.s32 %s33, %s40
      %s171 = sor.u32 %s169, %s170
      %p172 = scmp.eq.s32.totalorder %s171, 0
      %s174 = sadd.s32 %s173, 1
      %s175 = scalar_select %p172, %s173, %s174
      %p178 = pneg %p172
      %p179 = scmp.eq.s32.totalorder %s25, 3
      %p180 = por %p178, %p179
      %p181 = scmp.ne.s32.totalorder %s173, %s176
      %p182 = scmp.eq.s32.totalorder %s25, 0
      %p183 = por %p181, %p182
      %p184 = scmp.ne.s32.totalorder %s173, %s176
      %p185 = scmp.eq.s32.totalorder %s30, 3
      %p186 = por %p184, %p185
      %p187 = scmp.ne.s32.totalorder %s176, %s177
      %p188 = scmp.eq.s32.totalorder %s30, 0
      %p189 = por %p187, %p188
      %p190 = scmp.ne.s32.totalorder %s176, %s177
      %p191 = scmp.eq.s32.totalorder %s31, 3
      %p192 = por %p190, %p191
      %p194 = scmp.ne.s32.totalorder %s177, %s193
      %p195 = scmp.eq.s32.totalorder %s31, 0
      %p196 = por %p194, %p195
      %s197 = ssub.s32 %s32, %s44
      %s198 = ssub.s32 %s33, %s40
      %s199 = sor.u32 %s197, %s198
      %p200 = scmp.eq.s32.totalorder %s199, 0
      %s202 = sadd.s32 %s201, 1
      %s203 = scalar_select %p200, %s201, %s202
      %p206 = pneg %p200
      %p207 = scmp.eq.s32.totalorder %s25, 3
      %p208 = por %p206, %p207
      %p209 = scmp.ne.s32.totalorder %s201, %s204
      %p210 = scmp.eq.s32.totalorder %s25, 0
      %p211 = por %p209, %p210
      %p212 = scmp.ne.s32.totalorder %s201, %s204
      %p213 = scmp.eq.s32.totalorder %s30, 3
      %p214 = por %p212, %p213
      %p215 = scmp.ne.s32.totalorder %s204, %s205
      %p216 = scmp.eq.s32.totalorder %s30, 0
      %p217 = por %p215, %p216
      %p218 = scmp.ne.s32.totalorder %s204, %s205
      %p219 = scmp.eq.s32.totalorder %s31, 3
      %p220 = por %p218, %p219
      %p222 = scmp.ne.s32.totalorder %s205, %s221
      %p223 = scmp.eq.s32.totalorder %s31, 0
      %p224 = por %p222, %p223
      %p225 = scmp.le.s32.totalorder 1, %s25
      %p226 = scmp.lt.s32.totalorder %s25, 5
      %p227 = pnand %p225, %p226
      %p228 = pneg %p227
      // Predicated region
      $region9: #{tpu_custom_call.1} parent=5 // pred_check
        _
      $region10: #{tpu_custom_call.1} parent=5 // pred_check_branch
        %230 = sbr.rel (%p227) target = $region12
      $region11: #{tpu_custom_call.1} parent=5 // pred_region
        %s231 = ssub.s32 %s25, 1
        // Predicated region
        $region13: #{tpu_custom_call.1} parent=11 // pred_check
          %p232 = pneg %p58
        $region14: #{tpu_custom_call.1} parent=11 // pred_check_branch
          %234 = sbr.rel (%p232) target = $region16
        $region15: #{tpu_custom_call.1} parent=11 // pred_region
          _
        $region16: #{tpu_custom_call.1} parent=11 // pred_fallthru
          _
        // Predicated region
        $region17: #{tpu_custom_call.1} parent=11 // pred_check
          %p235 = pneg %p79
        $region18: #{tpu_custom_call.1} parent=11 // pred_check_branch
          %237 = sbr.rel (%p235) target = $region20
        $region19: #{tpu_custom_call.1} parent=11 // pred_region
          _
        $region20: #{tpu_custom_call.1} parent=11 // pred_fallthru
          _
      $region12: #{tpu_custom_call.1} parent=5 // pred_fallthru
        _
      %p238 = scmp.lt.s32.totalorder %s25, 4
      // Predicated region
      $region21: #{tpu_custom_call.1} parent=5 // pred_check
        %p239 = pneg %p238
      $region22: #{tpu_custom_call.1} parent=5 // pred_check_branch
        %241 = sbr.rel (%p239) target = $region24
      $region23: #{tpu_custom_call.1} parent=5 // pred_region
        // Predicated region
        $region25: #{tpu_custom_call.1} parent=23 // pred_check
          %p242 = pneg %p99
        $region26: #{tpu_custom_call.1} parent=23 // pred_check_branch
          %244 = sbr.rel (%p242) target = $region28
        $region27: #{tpu_custom_call.1} parent=23 // pred_region
          %s245 = sand.u32 %s89, 1
          %s246 = scalar_lea.sflag [#allocation3], %s245
          %s247 = sand.u32 %s89, 1
          %s248 = smul.addr %s247, 64
          %s249 = scalar_lea.vmem [#allocation2], %s248
          %s251 = ssub.s32 1024, 1024
          %252 = vsyncadd %s246, %s251
          %s253 = smul.addr %s33, 128
          %s254 = scalar_lea.hbm %s2, %s253
          %s255 = sshll.u32 %s249, 4
          %s256 = int_to_ptr.vmem [resolvable:$true] %s255
          %261 = dma.hbm_to_vmem [thread:$0]  %s254, 1024, %s256, %s246, 256, 128, 8
        $region28: #{tpu_custom_call.1} parent=23 // pred_fallthru
          _
        // Predicated region
        $region29: #{tpu_custom_call.1} parent=23 // pred_check
          %p262 = pneg %p127
        $region30: #{tpu_custom_call.1} parent=23 // pred_check_branch
          %264 = sbr.rel (%p262) target = $region32
        $region31: #{tpu_custom_call.1} parent=23 // pred_region
          %s265 = sand.u32 %s25, 1
          %s266 = scalar_lea.sflag [#allocation6], %s265
          %s267 = sand.u32 %s117, 1
          %s268 = smul.addr %s267, 32
          %s269 = scalar_lea.vmem [#allocation5], %s268
          %s271 = ssub.s32 512, 512
          %272 = vsyncadd %s266, %s271
          %s273 = smul.addr %s32, 8
          %s274 = sadd.s32 %s33, %s273
          %s275 = smul.addr %s274, 128
          %s276 = scalar_lea.hbm %s3, %s275
          %s277 = sshll.u32 %s269, 4
          %s278 = int_to_ptr.vmem [resolvable:$true] %s277
          %283 = dma.hbm_to_vmem [thread:$0]  %s276, 512, %s278, %s266, 256, 128, 8
        $region32: #{tpu_custom_call.1} parent=23 // pred_fallthru
          _
        // Predicated region
        $region33: #{tpu_custom_call.1} parent=23 // pred_check
          %p284 = pneg %p155
        $region34: #{tpu_custom_call.1} parent=23 // pred_check_branch
          %286 = sbr.rel (%p284) target = $region36
        $region35: #{tpu_custom_call.1} parent=23 // pred_region
          %s287 = sand.u32 %s25, 1
          %s288 = scalar_lea.sflag [#allocation6], %s287
          %s289 = sand.u32 %s145, 1
          %s290 = smul.addr %s289, 32
          %s291 = scalar_lea.vmem [#allocation7], %s290
          %s293 = ssub.s32 512, 512
          %294 = vsyncadd %s288, %s293
          %s295 = smul.addr %s32, 8
          %s296 = sadd.s32 %s33, %s295
          %s297 = smul.addr %s296, 128
          %s298 = scalar_lea.hbm %s4, %s297
          %s299 = sshll.u32 %s291, 4
          %s300 = int_to_ptr.vmem [resolvable:$true] %s299
          %305 = dma.hbm_to_vmem [thread:$0]  %s298, 512, %s300, %s288, 256, 128, 8
        $region36: #{tpu_custom_call.1} parent=23 // pred_fallthru
          _
      $region24: #{tpu_custom_call.1} parent=5 // pred_fallthru
        _
      %p306 = scmp.le.s32.totalorder 1, %s25
      %p307 = scmp.lt.s32.totalorder %s25, 5
      %p308 = pnand %p306, %p307
      %p309 = pneg %p308
      // Predicated region
      $region37: #{tpu_custom_call.1} parent=5 // pred_check
        _
      $region38: #{tpu_custom_call.1} parent=5 // pred_check_branch
        %311 = sbr.rel (%p308) target = $region40
      $region39: #{tpu_custom_call.1} parent=5 // pred_region
        %s312 = ssub.s32 %s25, 1
        %s313 = sand.u32 %s92, 1
        %s314 = scalar_lea.sflag [#allocation3], %s313
        %s315 = sand.u32 %s92, 1
        %s316 = smul.addr %s315, 64
        %s317 = scalar_lea.vmem [#allocation2], %s316
        // Predicated region
        $region41: #{tpu_custom_call.1} parent=39 // pred_check
          %p318 = pneg %p105
        $region42: #{tpu_custom_call.1} parent=39 // pred_check_branch
          %320 = sbr.rel (%p318) target = $region44
        $region43: #{tpu_custom_call.1} parent=39 // pred_region
          %321 = dma.done %s314, 1024
        $region44: #{tpu_custom_call.1} parent=39 // pred_fallthru
          _
        %s322 = sand.u32 %s30, 1
        %s323 = scalar_lea.sflag [#allocation6], %s322
        %s324 = sand.u32 %s120, 1
        %s325 = smul.addr %s324, 32
        %s326 = scalar_lea.vmem [#allocation5], %s325
        // Predicated region
        $region45: #{tpu_custom_call.1} parent=39 // pred_check
          %p327 = pneg %p133
        $region46: #{tpu_custom_call.1} parent=39 // pred_check_branch
          %329 = sbr.rel (%p327) target = $region48
        $region47: #{tpu_custom_call.1} parent=39 // pred_region
          %330 = dma.done %s323, 512
        $region48: #{tpu_custom_call.1} parent=39 // pred_fallthru
          _
        %s331 = sand.u32 %s30, 1
        %s332 = scalar_lea.sflag [#allocation6], %s331
        %s333 = sand.u32 %s148, 1
        %s334 = smul.addr %s333, 32
        %s335 = scalar_lea.vmem [#allocation7], %s334
        // Predicated region
        $region49: #{tpu_custom_call.1} parent=39 // pred_check
          %p336 = pneg %p161
        $region50: #{tpu_custom_call.1} parent=39 // pred_check_branch
          %338 = sbr.rel (%p336) target = $region52
        $region51: #{tpu_custom_call.1} parent=39 // pred_region
          %339 = dma.done %s332, 512
        $region52: #{tpu_custom_call.1} parent=39 // pred_fallthru
          _
        %p340 = pneg %p58
        %p341 = pneg %p55
        %p342 = pneg %p79
        %p343 = pneg %p76
        %s344 = sand.u32 %s92, 1
        %s345 = scalar_lea.sflag [#allocation3], %s344
        %s346 = sand.u32 %s92, 1
        %s347 = smul.addr %s346, 64
        %s348 = scalar_lea.vmem [#allocation2], %s347
        %p349 = pneg %p105
        %p350 = pneg %p102
        %s351 = sand.u32 %s30, 1
        %s352 = scalar_lea.sflag [#allocation6], %s351
        %s353 = sand.u32 %s120, 1
        %s354 = smul.addr %s353, 32
        %s355 = scalar_lea.vmem [#allocation5], %s354
        %p356 = pneg %p133
        %p357 = pneg %p130
        %s358 = sand.u32 %s30, 1
        %s359 = scalar_lea.sflag [#allocation6], %s358
        %s360 = sand.u32 %s148, 1
        %s361 = smul.addr %s360, 32
        %s362 = scalar_lea.vmem [#allocation7], %s361
        %p363 = pneg %p161
        %p364 = pneg %p158
        %p365 = pneg %p189
        %p366 = pneg %p186
        %s367 = sand.u32 %s176, 1
        %s368 = scalar_lea.sflag [#allocation4], %s367
        %s369 = sand.u32 %s176, 1
        %s370 = smul.addr %s369, 32
        %s371 = scalar_lea.vmem [#allocation8], %s370
        %p372 = pneg %p217
        %p373 = pneg %p214
        %s374 = sand.u32 %s204, 1
        %s375 = scalar_lea.sflag [#allocation10], %s374
        %s376 = sand.u32 %s204, 1
        %s377 = smul.addr %s376, 32
        %s378 = scalar_lea.vmem [#allocation9], %s377
        %v380 = vld [vmem:[%s326] sm:$0xff]
        %v381 = vld [vmem:[%s326 + $0x8] sm:$0xff]
        %v382 = vld [vmem:[%s326 + $0x10] sm:$0xff]
        %v383 = vld [vmem:[%s326 + $0x18] sm:$0xff]
        %v384 = vpack.c.bf16 %v381, %v380
        %v385 = vpack.c.bf16 %v383, %v382
        %v386 = vld [vmem:[%s335] sm:$0xff]
        %v387 = vld [vmem:[%s335 + $0x8] sm:$0xff]
        %v388 = vld [vmem:[%s335 + $0x10] sm:$0xff]
        %v389 = vld [vmem:[%s335 + $0x18] sm:$0xff]
        %v390 = vpack.c.bf16 %v387, %v386
        %v391 = vpack.c.bf16 %v389, %v388
        %v392 = vld [vmem:[%s0] sm:$0xf]
        %v393 = vld [vmem:[%s0 + $0x4] sm:$0xf]
        %v394 = vld [vmem:[%s0 + $0x8] sm:$0xf]
        %v395 = vld [vmem:[%s0 + $0xc] sm:$0xf]
        %v396 = vld [vmem:[%s0 + $0x10] sm:$0xf]
        %v397 = vld [vmem:[%s0 + $0x14] sm:$0xf]
        %v398 = vld [vmem:[%s0 + $0x18] sm:$0xf]
        %v399 = vld [vmem:[%s0 + $0x1c] sm:$0xf]
        %v400 = vld [vmem:[%s1] sm:$0xf]
        %v401 = vld [vmem:[%s1 + $0x4] sm:$0xf]
        %v402 = vld [vmem:[%s1 + $0x8] sm:$0xf]
        %v403 = vld [vmem:[%s1 + $0xc] sm:$0xf]
        %v404 = vld [vmem:[%s1 + $0x10] sm:$0xf]
        %v405 = vld [vmem:[%s1 + $0x14] sm:$0xf]
        %v406 = vld [vmem:[%s1 + $0x18] sm:$0xf]
        %v407 = vld [vmem:[%s1 + $0x1c] sm:$0xf]
        %v416 = vunpack.c.l.b16 %v400
        %v417 = vunpack.c.l.b16 %v401
        %v418 = vunpack.c.l.b16 %v402
        %v419 = vunpack.c.l.b16 %v403
        %v420 = vunpack.c.l.b16 %v404
        %v421 = vunpack.c.l.b16 %v405
        %v422 = vunpack.c.l.b16 %v406
        %v423 = vunpack.c.l.b16 %v407
        %v424 = vpack.c.b16 %v417, %v416
        %v425 = vpack.c.b16 %v419, %v418
        %v426 = vpack.c.b16 %v421, %v420
        %v427 = vpack.c.b16 %v423, %v422
        %vm428 = vcmask 261120
        %v430 = vsel %vm428, %v424, 0
        %v433 = vsel %vm428, %v425, 0
        %v436 = vsel %vm428, %v426, 0
        %v439 = vsel %vm428, %v427, 0
        %441 = vmatprep.subr.bf16.mxu0 0
        %442 = vmatpush1.bf16.msra.mxu0 0
        %443 = vmatprep.subr.bf16.mxu0 0
        %444 = vmatpush1.bf16.msra.mxu0 0
        %445 = vmatprep.subr.bf16.mxu0 0
        %446 = vmatpush1.bf16.msra.mxu0 0
        %447 = vmatprep.subr.bf16.mxu0 0
        %448 = vmatpush1.bf16.msra.mxu0 0
        %449 = vmatprep.subr.bf16.mxu0 0
        %450 = vmatpush1.bf16.msra.mxu0 0
        %451 = vmatprep.subr.bf16.mxu0 0
        %452 = vmatpush1.bf16.msra.mxu0 0
        %453 = vmatprep.subr.bf16.mxu0 0
        %454 = vmatpush1.bf16.msra.mxu0 %v391
        %455 = vmatprep.subr.bf16.mxu0 0
        %456 = vmatpush1.bf16.msra.mxu0 %v390
        %457 = vmatprep.subr.bf16.mxu0 0
        %458 = vmatpush2.bf16.msra.mxu0 0
        %459 = vmatprep.subr.bf16.mxu0 0
        %460 = vmatpush2.bf16.msra.mxu0 0
        %461 = vmatprep.subr.bf16.mxu0 0
        %462 = vmatpush2.bf16.msra.mxu0 0
        %463 = vmatprep.subr.bf16.mxu0 0
        %464 = vmatpush2.bf16.msra.mxu0 0
        %465 = vmatprep.subr.bf16.mxu0 0
        %466 = vmatpush2.bf16.msra.mxu0 0
        %467 = vmatprep.subr.bf16.mxu0 0
        %468 = vmatpush2.bf16.msra.mxu0 0
        %469 = vmatprep.subr.bf16.mxu0 0
        %470 = vmatpush2.bf16.msra.mxu0 0
        %471 = vmatprep.subr.bf16.mxu0 0
        %472 = vmatpush2.bf16.msra.mxu0 0
        %473 = vmatprep.mubr.bf16.mxu0 0
        %474 = vmatmul.mubr.bf16.gmra.mxu0 %v430
        %v475 = vpop.f32.mrf.mxu0
        %v476 = vadd.f32 0.0, %v475
        %v477 = vpop.f32.mrf.mxu0
        %v478 = vpop.f32.mrf.mxu0
        %v479 = vadd.f32 0.0, %v478
        %v480 = vpop.f32.mrf.mxu0
        %481 = vmatprep.mubr.bf16.mxu0 0
        %482 = vmatmul.mubr.bf16.gmra.mxu0 %v433
        %v483 = vpop.f32.mrf.mxu0
        %v484 = vadd.f32 0.0, %v483
        %v485 = vpop.f32.mrf.mxu0
        %v486 = vpop.f32.mrf.mxu0
        %v487 = vadd.f32 0.0, %v486
        %v488 = vpop.f32.mrf.mxu0
        %489 = vmatprep.mubr.bf16.mxu0 0
        %490 = vmatmul.mubr.bf16.gmra.mxu0 %v436
        %v491 = vpop.f32.mrf.mxu0
        %v492 = vadd.f32 0.0, %v491
        %v493 = vpop.f32.mrf.mxu0
        %v494 = vpop.f32.mrf.mxu0
        %v495 = vadd.f32 0.0, %v494
        %v496 = vpop.f32.mrf.mxu0
        %497 = vmatprep.mubr.bf16.mxu0 0
        %498 = vmatmul.mubr.bf16.gmra.mxu0 %v439
        %v499 = vpop.f32.mrf.mxu0
        %v500 = vadd.f32 0.0, %v499
        %v501 = vpop.f32.mrf.mxu0
        %v502 = vpop.f32.mrf.mxu0
        %v503 = vadd.f32 0.0, %v502
        %v504 = vpop.f32.mrf.mxu0
        %505 = vdwg.mxu0
        %v514 = vunpack.c.l.b16 %v392
        %v515 = vunpack.c.l.b16 %v393
        %v516 = vunpack.c.l.b16 %v394
        %v517 = vunpack.c.l.b16 %v395
        %v518 = vunpack.c.l.b16 %v396
        %v519 = vunpack.c.l.b16 %v397
        %v520 = vunpack.c.l.b16 %v398
        %v521 = vunpack.c.l.b16 %v399
        %v522 = vpack.c.b16 %v515, %v514
        %v523 = vpack.c.b16 %v517, %v516
        %v524 = vpack.c.b16 %v519, %v518
        %v525 = vpack.c.b16 %v521, %v520
        %v527 = vsel %vm428, %v522, 0
        %v530 = vsel %vm428, %v523, 0
        %v533 = vsel %vm428, %v524, 0
        %v536 = vsel %vm428, %v525, 0
        %538 = vmatprep.subr.bf16.mxu0 0
        %539 = vmatpush1.bf16.msra.mxu0 0
        %540 = vmatprep.subr.bf16.mxu0 0
        %541 = vmatpush1.bf16.msra.mxu0 0
        %542 = vmatprep.subr.bf16.mxu0 0
        %543 = vmatpush1.bf16.msra.mxu0 0
        %544 = vmatprep.subr.bf16.mxu0 0
        %545 = vmatpush1.bf16.msra.mxu0 0
        %546 = vmatprep.subr.bf16.mxu0 0
        %547 = vmatpush1.bf16.msra.mxu0 0
        %548 = vmatprep.subr.bf16.mxu0 0
        %549 = vmatpush1.bf16.msra.mxu0 0
        %550 = vmatprep.subr.bf16.mxu0 0
        %551 = vmatpush1.bf16.msra.mxu0 %v385
        %552 = vmatprep.subr.bf16.mxu0 0
        %553 = vmatpush1.bf16.msra.mxu0 %v384
        %554 = vmatprep.subr.bf16.mxu0 0
        %555 = vmatpush2.bf16.msra.mxu0 0
        %556 = vmatprep.subr.bf16.mxu0 0
        %557 = vmatpush2.bf16.msra.mxu0 0
        %558 = vmatprep.subr.bf16.mxu0 0
        %559 = vmatpush2.bf16.msra.mxu0 0
        %560 = vmatprep.subr.bf16.mxu0 0
        %561 = vmatpush2.bf16.msra.mxu0 0
        %562 = vmatprep.subr.bf16.mxu0 0
        %563 = vmatpush2.bf16.msra.mxu0 0
        %564 = vmatprep.subr.bf16.mxu0 0
        %565 = vmatpush2.bf16.msra.mxu0 0
        %566 = vmatprep.subr.bf16.mxu0 0
        %567 = vmatpush2.bf16.msra.mxu0 0
        %568 = vmatprep.subr.bf16.mxu0 0
        %569 = vmatpush2.bf16.msra.mxu0 0
        %570 = vmatprep.mubr.bf16.mxu0 0
        %571 = vmatmul.mubr.bf16.gmra.mxu0 %v527
        %v572 = vpop.f32.mrf.mxu0
        %v573 = vadd.f32 %v476, %v572
        %v574 = vpop.f32.mrf.mxu0
        %v575 = vpop.f32.mrf.mxu0
        %v576 = vadd.f32 %v479, %v575
        %v577 = vpop.f32.mrf.mxu0
        %578 = vmatprep.mubr.bf16.mxu0 0
        %579 = vmatmul.mubr.bf16.gmra.mxu0 %v530
        %v580 = vpop.f32.mrf.mxu0
        %v581 = vadd.f32 %v484, %v580
        %v582 = vpop.f32.mrf.mxu0
        %v583 = vpop.f32.mrf.mxu0
        %v584 = vadd.f32 %v487, %v583
        %v585 = vpop.f32.mrf.mxu0
        %586 = vmatprep.mubr.bf16.mxu0 0
        %587 = vmatmul.mubr.bf16.gmra.mxu0 %v533
        %v588 = vpop.f32.mrf.mxu0
        %v589 = vadd.f32 %v492, %v588
        %v590 = vpop.f32.mrf.mxu0
        %v591 = vpop.f32.mrf.mxu0
        %v592 = vadd.f32 %v495, %v591
        %v593 = vpop.f32.mrf.mxu0
        %594 = vmatprep.mubr.bf16.mxu0 0
        %595 = vmatmul.mubr.bf16.gmra.mxu0 %v536
        %v596 = vpop.f32.mrf.mxu0
        %v597 = vadd.f32 %v500, %v596
        %v598 = vpop.f32.mrf.mxu0
        %v599 = vpop.f32.mrf.mxu0
        %v600 = vadd.f32 %v503, %v599
        %v601 = vpop.f32.mrf.mxu0
        %602 = vdwg.mxu0
        %v603 = vld [vmem:[%s317] sm:$0xff]
        %v604 = vld [vmem:[%s317 + $0x8] sm:$0xff]
        %v605 = vld [vmem:[%s317 + $0x10] sm:$0xff]
        %v606 = vld [vmem:[%s317 + $0x18] sm:$0xff]
        %v607 = vld [vmem:[%s317 + $0x20] sm:$0xff]
        %v608 = vld [vmem:[%s317 + $0x28] sm:$0xff]
        %v609 = vld [vmem:[%s317 + $0x30] sm:$0xff]
        %v610 = vld [vmem:[%s317 + $0x38] sm:$0xff]
        %v611 = vadd.f32 %v573, %v603
        %v612 = vadd.f32 %v576, %v604
        %v613 = vadd.f32 %v581, %v605
        %v614 = vadd.f32 %v584, %v606
        %v615 = vadd.f32 %v589, %v607
        %v616 = vadd.f32 %v592, %v608
        %v617 = vadd.f32 %v597, %v609
        %v618 = vadd.f32 %v600, %v610
        %v619 = vxor.u32 %v611, 2147483648
        %v620 = vxor.u32 %v612, 2147483648
        %v621 = vxor.u32 %v613, 2147483648
        %v622 = vxor.u32 %v614, 2147483648
        %v623 = vmul.f32 %v619, 1.442695
        %v624 = vpow.pop %v623
        %v625 = vmul.f32 %v620, 1.442695
        %v626 = vpow.pop %v625
        %v627 = vmul.f32 %v621, 1.442695
        %v628 = vpow.pop %v627
        %v629 = vmul.f32 %v622, 1.442695
        %v630 = vpow.pop %v629
        %v631 = vadd.f32 %v624, 1.0
        %v632 = vadd.f32 %v626, 1.0
        %v633 = vadd.f32 %v628, 1.0
        %v634 = vadd.f32 %v630, 1.0
        %v635 = vrcp.pop %v631
        %v636 = vmul.f32 1.0, %v635
        %v637 = vrcp.pop %v632
        %v638 = vmul.f32 1.0, %v637
        %v639 = vrcp.pop %v633
        %v640 = vmul.f32 1.0, %v639
        %v641 = vrcp.pop %v634
        %v642 = vmul.f32 1.0, %v641
        %643 = vst [vmem:[%s371] sm:$0xff] %v636
        %644 = vst [vmem:[%s371 + $0x8] sm:$0xff] %v638
        %645 = vst [vmem:[%s371 + $0x10] sm:$0xff] %v640
        %646 = vst [vmem:[%s371 + $0x18] sm:$0xff] %v642
        %v647 = vtanh.pop %v615
        %v648 = vtanh.pop %v616
        %v649 = vtanh.pop %v617
        %v650 = vtanh.pop %v618
        %651 = vst [vmem:[%s378] sm:$0xff] %v647
        %652 = vst [vmem:[%s378 + $0x8] sm:$0xff] %v648
        %653 = vst [vmem:[%s378 + $0x10] sm:$0xff] %v649
        %654 = vst [vmem:[%s378 + $0x18] sm:$0xff] %v650
        %s655 = sand.u32 %s176, 1
        %s656 = scalar_lea.sflag [#allocation4], %s655
        %s657 = sand.u32 %s176, 1
        %s658 = smul.addr %s657, 32
        %s659 = scalar_lea.vmem [#allocation8], %s658
        %s660 = sand.u32 %s204, 1
        %s661 = scalar_lea.sflag [#allocation10], %s660
        %s662 = sand.u32 %s204, 1
        %s663 = smul.addr %s662, 32
        %s664 = scalar_lea.vmem [#allocation9], %s663
        // Predicated region
        $region53: #{tpu_custom_call.1} parent=39 // pred_check
          %p665 = pneg %p186
        $region54: #{tpu_custom_call.1} parent=39 // pred_check_branch
          %667 = sbr.rel (%p665) target = $region56
        $region55: #{tpu_custom_call.1} parent=39 // pred_region
          %s669 = ssub.s32 512, 512
          %670 = vsyncadd %s656, %s669
          %s671 = smul.addr %s34, 8
          %s672 = sadd.s32 %s35, %s671
          %s673 = smul.addr %s672, 128
          %s674 = scalar_lea.hbm %s5, %s673
          %s675 = sshll.u32 %s659, 4
          %s676 = int_to_ptr.vmem [resolvable:$true] %s675
          %681 = dma.vmem_to_hbm [thread:$0]  %s676, 512, %s674, %s656, 128, 256, 8
        $region56: #{tpu_custom_call.1} parent=39 // pred_fallthru
          _
        // Predicated region
        $region57: #{tpu_custom_call.1} parent=39 // pred_check
          %p682 = pneg %p214
        $region58: #{tpu_custom_call.1} parent=39 // pred_check_branch
          %684 = sbr.rel (%p682) target = $region60
        $region59: #{tpu_custom_call.1} parent=39 // pred_region
          %s686 = ssub.s32 512, 512
          %687 = vsyncadd %s661, %s686
          %s688 = smul.addr %s34, 8
          %s689 = sadd.s32 %s35, %s688
          %s690 = smul.addr %s689, 128
          %s691 = scalar_lea.hbm %s6, %s690
          %s692 = sshll.u32 %s664, 4
          %s693 = int_to_ptr.vmem [resolvable:$true] %s692
          %698 = dma.vmem_to_hbm [thread:$0]  %s693, 512, %s691, %s661, 128, 256, 8
        $region60: #{tpu_custom_call.1} parent=39 // pred_fallthru
          _
      $region40: #{tpu_custom_call.1} parent=5 // pred_fallthru
        _
      %p699 = scmp.le.s32.totalorder 2, %s25
      // Predicated region
      $region61: #{tpu_custom_call.1} parent=5 // pred_check
        %p700 = pneg %p699
      $region62: #{tpu_custom_call.1} parent=5 // pred_check_branch
        %702 = sbr.rel (%p700) target = $region64
      $region63: #{tpu_custom_call.1} parent=5 // pred_region
        %s703 = ssub.s32 %s25, 2
        // Predicated region
        $region65: #{tpu_custom_call.1} parent=63 // pred_check
          %p704 = pneg %p192
        $region66: #{tpu_custom_call.1} parent=63 // pred_check_branch
          %706 = sbr.rel (%p704) target = $region68
        $region67: #{tpu_custom_call.1} parent=63 // pred_region
          %s707 = sand.u32 %s177, 1
          %s708 = scalar_lea.sflag [#allocation4], %s707
          %s709 = sand.u32 %s177, 1
          %s710 = smul.addr %s709, 32
          %s711 = scalar_lea.vmem [#allocation8], %s710
          %712 = dma.done %s708, 512
        $region68: #{tpu_custom_call.1} parent=63 // pred_fallthru
          _
        // Predicated region
        $region69: #{tpu_custom_call.1} parent=63 // pred_check
          %p713 = pneg %p220
        $region70: #{tpu_custom_call.1} parent=63 // pred_check_branch
          %715 = sbr.rel (%p713) target = $region72
        $region71: #{tpu_custom_call.1} parent=63 // pred_region
          %s716 = sand.u32 %s205, 1
          %s717 = scalar_lea.sflag [#allocation10], %s716
          %s718 = sand.u32 %s205, 1
          %s719 = smul.addr %s718, 32
          %s720 = scalar_lea.vmem [#allocation9], %s719
          %721 = dma.done %s717, 512
        $region72: #{tpu_custom_call.1} parent=63 // pred_fallthru
          _
      $region64: #{tpu_custom_call.1} parent=5 // pred_fallthru
        _
    $region6: #{tpu_custom_call.1} parent=1 // loop_footer
      %s29 = sadd.s32 1, %s25
    $region7: #{tpu_custom_call.1} parent=1 // loop_footer_branch
      %24 = sbr.rel target = $region3
    $region8: #{tpu_custom_call.1} parent=1 // loop_exit
      _
    %722 = vsyncpa [#allocation3], 1
    %s723 = scalar_lea.sflag [#allocation3], 1
    %724 = vsyncpa %s723, 1
    %725 = vsyncpa [#allocation6], 1
    %s726 = scalar_lea.sflag [#allocation6], 1
    %727 = vsyncpa %s726, 1
    %728 = vsyncpa [#allocation4], 1
    %s729 = scalar_lea.sflag [#allocation4], 1
    %730 = vsyncpa %s729, 1
    %731 = vsyncpa [#allocation10], 1
    %s732 = scalar_lea.sflag [#allocation10], 1
    %733 = vsyncpa %s732, 1

// kernel: tpu_custom_call.1
$region0: #{tpu_custom_call.1}
  #allocation0 [shape = 'u32[]', space=smem, size = 0x4, offset = 0x4, fixed_abs, tag = 'smem constant byte address 0x4 - core index']
  #allocation1 [shape = 'u32[144,128]{1,0:T(1,128)}', space=vmem, size = 0x12000, scoped, tag = 'internal scratch']
  %s0 = inlined_call_operand.vmem [shape: bf16[64,32], index: 0, kind: input, shape index: {}]
  %s1 = inlined_call_operand.vmem [shape: bf16[64,32], index: 1, kind: input, shape index: {}]
  %s2 = inlined_call_operand.hbm [shape: f32[64,256], index: 2, kind: input, shape index: {}]
  %s3 = inlined_call_operand.hbm [shape: f32[2,32,256], index: 3, kind: input, shape index: {}]
  %s4 = inlined_call_operand.hbm [shape: f32[2,32,256], index: 4, kind: input, shape index: {}]
  %s5 = inlined_call_operand.hbm [shape: f32[2,32,256], index: 5, kind: output, shape index: {0}]
  %s6 = inlined_call_operand.hbm [shape: f32[2,32,256], index: 6, kind: output, shape index: {1}]
  %7 = xla_tuple %s5, %s6
  %s8 = sld [smem:[#allocation0]]
  $region73: #{tpu_custom_call.1} parent=0
    _
  %s10 = ssub.s32 1, %s8
  %s11 = scalar_select 0, %s10, %s8
  $region1: #{tpu_custom_call.1} parent=0
    #allocation2 [shape = 'u8[65536]{0}', space=vmem, size = 0x10000, scoped, tag = 'input window, operand 2']
    #allocation3 [shape = 's32[2]{0}', space=sflag, size = 0x8, scoped, tag = 'scoped memory for tpu_custom_call.1']
    #allocation4 [shape = 's32[2]{0}', space=sflag, size = 0x8, scoped, tag = 'scoped memory for tpu_custom_call.1']
    #allocation5 [shape = 'u8[32768]{0}', space=vmem, size = 0x8000, scoped, tag = 'input window, operand 3']
    #allocation6 [shape = 's32[2]{0}', space=sflag, size = 0x8, scoped, tag = 'scoped memory for tpu_custom_call.1']
    #allocation7 [shape = 'u8[32768]{0}', space=vmem, size = 0x8000, scoped, tag = 'input window, operand 4']
    #allocation8 [shape = 'u8[32768]{0}', space=vmem, size = 0x8000, scoped, tag = 'output window, operand 0']
    #allocation9 [shape = 'u8[32768]{0}', space=vmem, size = 0x8000, scoped, tag = 'output window, operand 1']
    #allocation10 [shape = 's32[2]{0}', space=sflag, size = 0x8, scoped, tag = 'scoped memory for tpu_custom_call.1']
    %12 = vsyncpa [#allocation3], 0
    %s13 = scalar_lea.sflag [#allocation3], 1
    %14 = vsyncpa %s13, 0
    %15 = vsyncpa [#allocation6], 0
    %s16 = scalar_lea.sflag [#allocation6], 1
    %17 = vsyncpa %s16, 0
    %18 = vsyncpa [#allocation4], 0
    %s19 = scalar_lea.sflag [#allocation4], 1
    %20 = vsyncpa %s19, 0
    %21 = vsyncpa [#allocation10], 0
    %s22 = scalar_lea.sflag [#allocation10], 1
    %23 = vsyncpa %s22, 0
    loop: start=0, step=1, limit=6
    $region2: #{tpu_custom_call.1} parent=1 // loop_pre_header
      _
    $region3: #{tpu_custom_call.1} parent=1 // loop_header
      %s25 = sphi 0, %s29
      %p26 = scmp.ge.s32.totalorder %s25, 6
      %s32 = sphi 0, %s44
      %s33 = sphi 0, %s40
      %s34 = sphi 0, %s32
      %s35 = sphi 0, %s33
      %s36 = sphi 0, %s34
      %s37 = sphi 0, %s35
      %s45 = sphi 0, %s45
      %s47 = sphi 0, %s45
      %s48 = sphi 0, %s47
      %s62 = sphi 0, %s48
      %s66 = sphi 0, %s66
      %s68 = sphi 0, %s66
      %s69 = sphi 0, %s68
      %s83 = sphi 0, %s69
      %s89 = sphi 0, %s91
      %s92 = sphi 0, %s89
      %s93 = sphi 0, %s92
      %s109 = sphi 0, %s93
      %s117 = sphi 0, %s119
      %s120 = sphi 0, %s117
      %s121 = sphi 0, %s120
      %s137 = sphi 0, %s121
      %s145 = sphi 0, %s147
      %s148 = sphi 0, %s145
      %s149 = sphi 0, %s148
      %s165 = sphi 0, %s149
      %s173 = sphi 0, %s175
      %s176 = sphi 0, %s173
      %s177 = sphi 0, %s176
      %s193 = sphi 0, %s177
      %s201 = sphi 0, %s203
      %s204 = sphi 0, %s201
      %s205 = sphi 0, %s204
      %s221 = sphi 0, %s205
    $region4: #{tpu_custom_call.1} parent=1 // loop_header_branch
      %28 = sbr.rel (%p26) target = $region8
    $region5: #{tpu_custom_call.1} parent=1 // loop_body
      %s30 = ssub.s32 %s25, 1
      %s31 = ssub.s32 %s25, 2
      %s38 = sadd.s32 1, %s33
      %p39 = scmp.ge.s32.totalorder %s38, 2
      %s40 = scalar_select %p39, 0, %s38
      %s41 = sadd.s32 1, %s32
      %s42 = scalar_select %p39, %s41, %s32
      %p43 = scmp.ge.s32.totalorder %s42, 2
      %s44 = scalar_select %p43, 0, %s42
      %s46 = sadd.s32 %s45, 1
      %p49 = scmp.eq.s32.totalorder %s25, 3
      %p50 = scmp.ne.s32.totalorder %s45, %s47
      %p51 = scmp.eq.s32.totalorder %s25, 0
      %p52 = por %p50, %p51
      %p53 = scmp.ne.s32.totalorder %s45, %s47
      %p54 = scmp.eq.s32.totalorder %s30, 3
      %p55 = por %p53, %p54
      %p56 = scmp.ne.s32.totalorder %s47, %s48
      %p57 = scmp.eq.s32.totalorder %s30, 0
      %p58 = por %p56, %p57
      %p59 = scmp.ne.s32.totalorder %s47, %s48
      %p60 = scmp.eq.s32.totalorder %s31, 3
      %p61 = por %p59, %p60
      %p63 = scmp.ne.s32.totalorder %s48, %s62
      %p64 = scmp.eq.s32.totalorder %s31, 0
      %p65 = por %p63, %p64
      %s67 = sadd.s32 %s66, 1
      %p70 = scmp.eq.s32.totalorder %s25, 3
      %p71 = scmp.ne.s32.totalorder %s66, %s68
      %p72 = scmp.eq.s32.totalorder %s25, 0
      %p73 = por %p71, %p72
      %p74 = scmp.ne.s32.totalorder %s66, %s68
      %p75 = scmp.eq.s32.totalorder %s30, 3
      %p76 = por %p74, %p75
      %p77 = scmp.ne.s32.totalorder %s68, %s69
      %p78 = scmp.eq.s32.totalorder %s30, 0
      %p79 = por %p77, %p78
      %p80 = scmp.ne.s32.totalorder %s68, %s69
      %p81 = scmp.eq.s32.totalorder %s31, 3
      %p82 = por %p80, %p81
      %p84 = scmp.ne.s32.totalorder %s69, %s83
      %p85 = scmp.eq.s32.totalorder %s31, 0
      %p86 = por %p84, %p85
      %s87 = ssub.s32 %s33, %s40
      %p88 = scmp.eq.s32.totalorder %s87, 0
      %s90 = sadd.s32 %s89, 1
      %s91 = scalar_select %p88, %s89, %s90
      %p94 = pneg %p88
      %p95 = scmp.eq.s32.totalorder %s25, 3
      %p96 = por %p94, %p95
      %p97 = scmp.ne.s32.totalorder %s89, %s92
      %p98 = scmp.eq.s32.totalorder %s25, 0
      %p99 = por %p97, %p98
      %p100 = scmp.ne.s32.totalorder %s89, %s92
      %p101 = scmp.eq.s32.totalorder %s30, 3
      %p102 = por %p100, %p101
      %p103 = scmp.ne.s32.totalorder %s92, %s93
      %p104 = scmp.eq.s32.totalorder %s30, 0
      %p105 = por %p103, %p104
      %p106 = scmp.ne.s32.totalorder %s92, %s93
      %p107 = scmp.eq.s32.totalorder %s31, 3
      %p108 = por %p106, %p107
      %p110 = scmp.ne.s32.totalorder %s93, %s109
      %p111 = scmp.eq.s32.totalorder %s31, 0
      %p112 = por %p110, %p111
      %s113 = ssub.s32 %s32, %s44
      %s114 = ssub.s32 %s33, %s40
      %s115 = sor.u32 %s113, %s114
      %p116 = scmp.eq.s32.totalorder %s115, 0
      %s118 = sadd.s32 %s117, 1
      %s119 = scalar_select %p116, %s117, %s118
      %p122 = pneg %p116
      %p123 = scmp.eq.s32.totalorder %s25, 3
      %p124 = por %p122, %p123
      %p125 = scmp.ne.s32.totalorder %s117, %s120
      %p126 = scmp.eq.s32.totalorder %s25, 0
      %p127 = por %p125, %p126
      %p128 = scmp.ne.s32.totalorder %s117, %s120
      %p129 = scmp.eq.s32.totalorder %s30, 3
      %p130 = por %p128, %p129
      %p131 = scmp.ne.s32.totalorder %s120, %s121
      %p132 = scmp.eq.s32.totalorder %s30, 0
      %p133 = por %p131, %p132
      %p134 = scmp.ne.s32.totalorder %s120, %s121
      %p135 = scmp.eq.s32.totalorder %s31, 3
      %p136 = por %p134, %p135
      %p138 = scmp.ne.s32.totalorder %s121, %s137
      %p139 = scmp.eq.s32.totalorder %s31, 0
      %p140 = por %p138, %p139
      %s141 = ssub.s32 %s32, %s44
      %s142 = ssub.s32 %s33, %s40
      %s143 = sor.u32 %s141, %s142
      %p144 = scmp.eq.s32.totalorder %s143, 0
      %s146 = sadd.s32 %s145, 1
      %s147 = scalar_select %p144, %s145, %s146
      %p150 = pneg %p144
      %p151 = scmp.eq.s32.totalorder %s25, 3
      %p152 = por %p150, %p151
      %p153 = scmp.ne.s32.totalorder %s145, %s148
      %p154 = scmp.eq.s32.totalorder %s25, 0
      %p155 = por %p153, %p154
      %p156 = scmp.ne.s32.totalorder %s145, %s148
      %p157 = scmp.eq.s32.totalorder %s30, 3
      %p158 = por %p156, %p157
      %p159 = scmp.ne.s32.totalorder %s148, %s149
      %p160 = scmp.eq.s32.totalorder %s30, 0
      %p161 = por %p159, %p160
      %p162 = scmp.ne.s32.totalorder %s148, %s149
      %p163 = scmp.eq.s32.totalorder %s31, 3
      %p164 = por %p162, %p163
      %p166 = scmp.ne.s32.totalorder %s149, %s165
      %p167 = scmp.eq.s32.totalorder %s31, 0
      %p168 = por %p166, %p167
      %s169 = ssub.s32 %s32, %s44
      %s170 = ssub.s32 %s33, %s40
      %s171 = sor.u32 %s169, %s170
      %p172 = scmp.eq.s32.totalorder %s171, 0
      %s174 = sadd.s32 %s173, 1
      %s175 = scalar_select %p172, %s173, %s174
      %p178 = pneg %p172
      %p179 = scmp.eq.s32.totalorder %s25, 3
      %p180 = por %p178, %p179
      %p181 = scmp.ne.s32.totalorder %s173, %s176
      %p182 = scmp.eq.s32.totalorder %s25, 0
      %p183 = por %p181, %p182
      %p184 = scmp.ne.s32.totalorder %s173, %s176
      %p185 = scmp.eq.s32.totalorder %s30, 3
      %p186 = por %p184, %p185
      %p187 = scmp.ne.s32.totalorder %s176, %s177
      %p188 = scmp.eq.s32.totalorder %s30, 0
      %p189 = por %p187, %p188
      %p190 = scmp.ne.s32.totalorder %s176, %s177
      %p191 = scmp.eq.s32.totalorder %s31, 3
      %p192 = por %p190, %p191
      %p194 = scmp.ne.s32.totalorder %s177, %s193
      %p195 = scmp.eq.s32.totalorder %s31, 0
      %p196 = por %p194, %p195
      %s197 = ssub.s32 %s32, %s44
      %s198 = ssub.s32 %s33, %s40
      %s199 = sor.u32 %s197, %s198
      %p200 = scmp.eq.s32.totalorder %s199, 0
      %s202 = sadd.s32 %s201, 1
      %s203 = scalar_select %p200, %s201, %s202
      %p206 = pneg %p200
      %p207 = scmp.eq.s32.totalorder %s25, 3
      %p208 = por %p206, %p207
      %p209 = scmp.ne.s32.totalorder %s201, %s204
      %p210 = scmp.eq.s32.totalorder %s25, 0
      %p211 = por %p209, %p210
      %p212 = scmp.ne.s32.totalorder %s201, %s204
      %p213 = scmp.eq.s32.totalorder %s30, 3
      %p214 = por %p212, %p213
      %p215 = scmp.ne.s32.totalorder %s204, %s205
      %p216 = scmp.eq.s32.totalorder %s30, 0
      %p217 = por %p215, %p216
      %p218 = scmp.ne.s32.totalorder %s204, %s205
      %p219 = scmp.eq.s32.totalorder %s31, 3
      %p220 = por %p218, %p219
      %p222 = scmp.ne.s32.totalorder %s205, %s221
      %p223 = scmp.eq.s32.totalorder %s31, 0
      %p224 = por %p222, %p223
      %p225 = scmp.le.s32.totalorder 1, %s25
      %p226 = scmp.lt.s32.totalorder %s25, 5
      %p227 = pnand %p225, %p226
      %p228 = pneg %p227
      // Predicated region
      $region9: #{tpu_custom_call.1} parent=5 // pred_check
        _
      $region10: #{tpu_custom_call.1} parent=5 // pred_check_branch
        %230 = sbr.rel (%p227) target = $region12
      $region11: #{tpu_custom_call.1} parent=5 // pred_region
        %s231 = ssub.s32 %s25, 1
        // Predicated region
        $region13: #{tpu_custom_call.1} parent=11 // pred_check
          %p232 = pneg %p58
        $region14: #{tpu_custom_call.1} parent=11 // pred_check_branch
          %234 = sbr.rel (%p232) target = $region16
        $region15: #{tpu_custom_call.1} parent=11 // pred_region
          _
        $region16: #{tpu_custom_call.1} parent=11 // pred_fallthru
          _
        // Predicated region
        $region17: #{tpu_custom_call.1} parent=11 // pred_check
          %p235 = pneg %p79
        $region18: #{tpu_custom_call.1} parent=11 // pred_check_branch
          %237 = sbr.rel (%p235) target = $region20
        $region19: #{tpu_custom_call.1} parent=11 // pred_region
          _
        $region20: #{tpu_custom_call.1} parent=11 // pred_fallthru
          _
      $region12: #{tpu_custom_call.1} parent=5 // pred_fallthru
        _
      %p238 = scmp.lt.s32.totalorder %s25, 4
      // Predicated region
      $region21: #{tpu_custom_call.1} parent=5 // pred_check
        %p239 = pneg %p238
      $region22: #{tpu_custom_call.1} parent=5 // pred_check_branch
        %241 = sbr.rel (%p239) target = $region24
      $region23: #{tpu_custom_call.1} parent=5 // pred_region
        // Predicated region
        $region25: #{tpu_custom_call.1} parent=23 // pred_check
          %p242 = pneg %p99
        $region26: #{tpu_custom_call.1} parent=23 // pred_check_branch
          %244 = sbr.rel (%p242) target = $region28
        $region27: #{tpu_custom_call.1} parent=23 // pred_region
          %s245 = sand.u32 %s89, 1
          %s246 = scalar_lea.sflag [#allocation3], %s245
          %s247 = sand.u32 %s89, 1
          %s248 = smul.addr %s247, 64
          %s249 = scalar_lea.vmem [#allocation2], %s248
          %s251 = ssub.s32 1024, 1024
          %252 = vsyncadd %s246, %s251
          %s253 = smul.addr %s33, 128
          %s254 = scalar_lea.hbm %s2, %s253
          %s255 = sshll.u32 %s249, 4
          %s256 = int_to_ptr.vmem [resolvable:$true] %s255
          %261 = dma.hbm_to_vmem [thread:$0]  %s254, 1024, %s256, %s246, 256, 128, 8
        $region28: #{tpu_custom_call.1} parent=23 // pred_fallthru
          _
        // Predicated region
        $region29: #{tpu_custom_call.1} parent=23 // pred_check
          %p262 = pneg %p127
        $region30: #{tpu_custom_call.1} parent=23 // pred_check_branch
          %264 = sbr.rel (%p262) target = $region32
        $region31: #{tpu_custom_call.1} parent=23 // pred_region
          %s265 = sand.u32 %s25, 1
          %s266 = scalar_lea.sflag [#allocation6], %s265
          %s267 = sand.u32 %s117, 1
          %s268 = smul.addr %s267, 32
          %s269 = scalar_lea.vmem [#allocation5], %s268
          %s271 = ssub.s32 512, 512
          %272 = vsyncadd %s266, %s271
          %s273 = smul.addr %s32, 8
          %s274 = sadd.s32 %s33, %s273
          %s275 = smul.addr %s274, 128
          %s276 = scalar_lea.hbm %s3, %s275
          %s277 = sshll.u32 %s269, 4
          %s278 = int_to_ptr.vmem [resolvable:$true] %s277
          %283 = dma.hbm_to_vmem [thread:$0]  %s276, 512, %s278, %s266, 256, 128, 8
        $region32: #{tpu_custom_call.1} parent=23 // pred_fallthru
          _
        // Predicated region
        $region33: #{tpu_custom_call.1} parent=23 // pred_check
          %p284 = pneg %p155
        $region34: #{tpu_custom_call.1} parent=23 // pred_check_branch
          %286 = sbr.rel (%p284) target = $region36
        $region35: #{tpu_custom_call.1} parent=23 // pred_region
          %s287 = sand.u32 %s25, 1
          %s288 = scalar_lea.sflag [#allocation6], %s287
          %s289 = sand.u32 %s145, 1
          %s290 = smul.addr %s289, 32
          %s291 = scalar_lea.vmem [#allocation7], %s290
          %s293 = ssub.s32 512, 512
          %294 = vsyncadd %s288, %s293
          %s295 = smul.addr %s32, 8
          %s296 = sadd.s32 %s33, %s295
          %s297 = smul.addr %s296, 128
          %s298 = scalar_lea.hbm %s4, %s297
          %s299 = sshll.u32 %s291, 4
          %s300 = int_to_ptr.vmem [resolvable:$true] %s299
          %305 = dma.hbm_to_vmem [thread:$0]  %s298, 512, %s300, %s288, 256, 128, 8
        $region36: #{tpu_custom_call.1} parent=23 // pred_fallthru
          _
      $region24: #{tpu_custom_call.1} parent=5 // pred_fallthru
        _
      %p306 = scmp.le.s32.totalorder 1, %s25
      %p307 = scmp.lt.s32.totalorder %s25, 5
      %p308 = pnand %p306, %p307
      %p309 = pneg %p308
      // Predicated region
      $region37: #{tpu_custom_call.1} parent=5 // pred_check
        _
      $region38: #{tpu_custom_call.1} parent=5 // pred_check_branch
        %311 = sbr.rel (%p308) target = $region40
      $region39: #{tpu_custom_call.1} parent=5 // pred_region
        %s312 = ssub.s32 %s25, 1
        %s313 = sand.u32 %s92, 1
        %s314 = scalar_lea.sflag [#allocation3], %s313
        %s315 = sand.u32 %s92, 1
        %s316 = smul.addr %s315, 64
        %s317 = scalar_lea.vmem [#allocation2], %s316
        // Predicated region
        $region41: #{tpu_custom_call.1} parent=39 // pred_check
          %p318 = pneg %p105
        $region42: #{tpu_custom_call.1} parent=39 // pred_check_branch
          %320 = sbr.rel (%p318) target = $region44
        $region43: #{tpu_custom_call.1} parent=39 // pred_region
          %321 = dma.done %s314, 1024
        $region44: #{tpu_custom_call.1} parent=39 // pred_fallthru
          _
        %s322 = sand.u32 %s30, 1
        %s323 = scalar_lea.sflag [#allocation6], %s322
        %s324 = sand.u32 %s120, 1
        %s325 = smul.addr %s324, 32
        %s326 = scalar_lea.vmem [#allocation5], %s325
        // Predicated region
        $region45: #{tpu_custom_call.1} parent=39 // pred_check
          %p327 = pneg %p133
        $region46: #{tpu_custom_call.1} parent=39 // pred_check_branch
          %329 = sbr.rel (%p327) target = $region48
        $region47: #{tpu_custom_call.1} parent=39 // pred_region
          %330 = dma.done %s323, 512
        $region48: #{tpu_custom_call.1} parent=39 // pred_fallthru
          _
        %s331 = sand.u32 %s30, 1
        %s332 = scalar_lea.sflag [#allocation6], %s331
        %s333 = sand.u32 %s148, 1
        %s334 = smul.addr %s333, 32
        %s335 = scalar_lea.vmem [#allocation7], %s334
        // Predicated region
        $region49: #{tpu_custom_call.1} parent=39 // pred_check
          %p336 = pneg %p161
        $region50: #{tpu_custom_call.1} parent=39 // pred_check_branch
          %338 = sbr.rel (%p336) target = $region52
        $region51: #{tpu_custom_call.1} parent=39 // pred_region
          %339 = dma.done %s332, 512
        $region52: #{tpu_custom_call.1} parent=39 // pred_fallthru
          _
        %p340 = pneg %p58
        %p341 = pneg %p55
        %p342 = pneg %p79
        %p343 = pneg %p76
        %s344 = sand.u32 %s92, 1
        %s345 = scalar_lea.sflag [#allocation3], %s344
        %s346 = sand.u32 %s92, 1
        %s347 = smul.addr %s346, 64
        %s348 = scalar_lea.vmem [#allocation2], %s347
        %p349 = pneg %p105
        %p350 = pneg %p102
        %s351 = sand.u32 %s30, 1
        %s352 = scalar_lea.sflag [#allocation6], %s351
        %s353 = sand.u32 %s120, 1
        %s354 = smul.addr %s353, 32
        %s355 = scalar_lea.vmem [#allocation5], %s354
        %p356 = pneg %p133
        %p357 = pneg %p130
        %s358 = sand.u32 %s30, 1
        %s359 = scalar_lea.sflag [#allocation6], %s358
        %s360 = sand.u32 %s148, 1
        %s361 = smul.addr %s360, 32
        %s362 = scalar_lea.vmem [#allocation7], %s361
        %p363 = pneg %p161
        %p364 = pneg %p158
        %p365 = pneg %p189
        %p366 = pneg %p186
        %s367 = sand.u32 %s176, 1
        %s368 = scalar_lea.sflag [#allocation4], %s367
        %s369 = sand.u32 %s176, 1
        %s370 = smul.addr %s369, 32
        %s371 = scalar_lea.vmem [#allocation8], %s370
        %p372 = pneg %p217
        %p373 = pneg %p214
        %s374 = sand.u32 %s204, 1
        %s375 = scalar_lea.sflag [#allocation10], %s374
        %s376 = sand.u32 %s204, 1
        %s377 = smul.addr %s376, 32
        %s378 = scalar_lea.vmem [#allocation9], %s377
        %v380 = vld [vmem:[%s326] sm:$0xff]
        %v381 = vld [vmem:[%s326 + $0x8] sm:$0xff]
        %v382 = vld [vmem:[%s326 + $0x10] sm:$0xff]
        %v383 = vld [vmem:[%s326 + $0x18] sm:$0xff]
        %v384 = vpack.c.bf16 %v381, %v380
        %v385 = vpack.c.bf16 %v383, %v382
        %v386 = vld [vmem:[%s335] sm:$0xff]
        %v387 = vld [vmem:[%s335 + $0x8] sm:$0xff]
        %v388 = vld [vmem:[%s335 + $0x10] sm:$0xff]
        %v389 = vld [vmem:[%s335 + $0x18] sm:$0xff]
        %v390 = vpack.c.bf16 %v387, %v386
        %v391 = vpack.c.bf16 %v389, %v388
        %v392 = vld [vmem:[%s0] sm:$0xf]
        %v393 = vld [vmem:[%s0 + $0x4] sm:$0xf]
        %v394 = vld [vmem:[%s0 + $0x8] sm:$0xf]
        %v395 = vld [vmem:[%s0 + $0xc] sm:$0xf]
        %v396 = vld [vmem:[%s0 + $0x10] sm:$0xf]
        %v397 = vld [vmem:[%s0 + $0x14] sm:$0xf]
        %v398 = vld [vmem:[%s0 + $0x18] sm:$0xf]
        %v399 = vld [vmem:[%s0 + $0x1c] sm:$0xf]
        %v400 = vld [vmem:[%s1] sm:$0xf]
        %v401 = vld [vmem:[%s1 + $0x4] sm:$0xf]
        %v402 = vld [vmem:[%s1 + $0x8] sm:$0xf]
        %v403 = vld [vmem:[%s1 + $0xc] sm:$0xf]
        %v404 = vld [vmem:[%s1 + $0x10] sm:$0xf]
        %v405 = vld [vmem:[%s1 + $0x14] sm:$0xf]
        %v406 = vld [vmem:[%s1 + $0x18] sm:$0xf]
        %v407 = vld [vmem:[%s1 + $0x1c] sm:$0xf]
        %v416 = vunpack.c.l.b16 %v400
        %v417 = vunpack.c.l.b16 %v401
        %v418 = vunpack.c.l.b16 %v402
        %v419 = vunpack.c.l.b16 %v403
        %v420 = vunpack.c.l.b16 %v404
        %v421 = vunpack.c.l.b16 %v405
        %v422 = vunpack.c.l.b16 %v406
        %v423 = vunpack.c.l.b16 %v407
        %v424 = vpack.c.b16 %v417, %v416
        %v425 = vpack.c.b16 %v419, %v418
        %v426 = vpack.c.b16 %v421, %v420
        %v427 = vpack.c.b16 %v423, %v422
        %vm428 = vcmask 261120
        %v430 = vsel %vm428, %v424, 0
        %v433 = vsel %vm428, %v425, 0
        %v436 = vsel %vm428, %v426, 0
        %v439 = vsel %vm428, %v427, 0
        %441 = vmatprep.subr.bf16.mxu0 0
        %442 = vmatpush1.bf16.msra.mxu0 0
        %443 = vmatprep.subr.bf16.mxu0 0
        %444 = vmatpush1.bf16.msra.mxu0 0
        %445 = vmatprep.subr.bf16.mxu0 0
        %446 = vmatpush1.bf16.msra.mxu0 0
        %447 = vmatprep.subr.bf16.mxu0 0
        %448 = vmatpush1.bf16.msra.mxu0 0
        %449 = vmatprep.subr.bf16.mxu0 0
        %450 = vmatpush1.bf16.msra.mxu0 0
        %451 = vmatprep.subr.bf16.mxu0 0
        %452 = vmatpush1.bf16.msra.mxu0 0
        %453 = vmatprep.subr.bf16.mxu0 0
        %454 = vmatpush1.bf16.msra.mxu0 %v391
        %455 = vmatprep.subr.bf16.mxu0 0
        %456 = vmatpush1.bf16.msra.mxu0 %v390
        %457 = vmatprep.subr.bf16.mxu0 0
        %458 = vmatpush2.bf16.msra.mxu0 0
        %459 = vmatprep.subr.bf16.mxu0 0
        %460 = vmatpush2.bf16.msra.mxu0 0
        %461 = vmatprep.subr.bf16.mxu0 0
        %462 = vmatpush2.bf16.msra.mxu0 0
        %463 = vmatprep.subr.bf16.mxu0 0
        %464 = vmatpush2.bf16.msra.mxu0 0
        %465 = vmatprep.subr.bf16.mxu0 0
        %466 = vmatpush2.bf16.msra.mxu0 0
        %467 = vmatprep.subr.bf16.mxu0 0
        %468 = vmatpush2.bf16.msra.mxu0 0
        %469 = vmatprep.subr.bf16.mxu0 0
        %470 = vmatpush2.bf16.msra.mxu0 0
        %471 = vmatprep.subr.bf16.mxu0 0
        %472 = vmatpush2.bf16.msra.mxu0 0
        %473 = vmatprep.mubr.bf16.mxu0 0
        %474 = vmatmul.mubr.bf16.gmra.mxu0 %v430
        %v475 = vpop.f32.mrf.mxu0
        %v476 = vadd.f32 0.0, %v475
        %v477 = vpop.f32.mrf.mxu0
        %v478 = vpop.f32.mrf.mxu0
        %v479 = vadd.f32 0.0, %v478
        %v480 = vpop.f32.mrf.mxu0
        %481 = vmatprep.mubr.bf16.mxu0 0
        %482 = vmatmul.mubr.bf16.gmra.mxu0 %v433
        %v483 = vpop.f32.mrf.mxu0
        %v484 = vadd.f32 0.0, %v483
        %v485 = vpop.f32.mrf.mxu0
        %v486 = vpop.f32.mrf.mxu0
        %v487 = vadd.f32 0.0, %v486
        %v488 = vpop.f32.mrf.mxu0
        %489 = vmatprep.mubr.bf16.mxu0 0
        %490 = vmatmul.mubr.bf16.gmra.mxu0 %v436
        %v491 = vpop.f32.mrf.mxu0
        %v492 = vadd.f32 0.0, %v491
        %v493 = vpop.f32.mrf.mxu0
        %v494 = vpop.f32.mrf.mxu0
        %v495 = vadd.f32 0.0, %v494
        %v496 = vpop.f32.mrf.mxu0
        %497 = vmatprep.mubr.bf16.mxu0 0
        %498 = vmatmul.mubr.bf16.gmra.mxu0 %v439
        %v499 = vpop.f32.mrf.mxu0
        %v500 = vadd.f32 0.0, %v499
        %v501 = vpop.f32.mrf.mxu0
        %v502 = vpop.f32.mrf.mxu0
        %v503 = vadd.f32 0.0, %v502
        %v504 = vpop.f32.mrf.mxu0
        %505 = vdwg.mxu0
        %v514 = vunpack.c.l.b16 %v392
        %v515 = vunpack.c.l.b16 %v393
        %v516 = vunpack.c.l.b16 %v394
        %v517 = vunpack.c.l.b16 %v395
        %v518 = vunpack.c.l.b16 %v396
        %v519 = vunpack.c.l.b16 %v397
        %v520 = vunpack.c.l.b16 %v398
        %v521 = vunpack.c.l.b16 %v399
        %v522 = vpack.c.b16 %v515, %v514
        %v523 = vpack.c.b16 %v517, %v516
        %v524 = vpack.c.b16 %v519, %v518
        %v525 = vpack.c.b16 %v521, %v520
        %v527 = vsel %vm428, %v522, 0
        %v530 = vsel %vm428, %v523, 0
        %v533 = vsel %vm428, %v524, 0
        %v536 = vsel %vm428, %v525, 0
        %538 = vmatprep.subr.bf16.mxu0 0
        %539 = vmatpush1.bf16.msra.mxu0 0
        %540 = vmatprep.subr.bf16.mxu0 0
        %541 = vmatpush1.bf16.msra.mxu0 0
        %542 = vmatprep.subr.bf16.mxu0 0
        %543 = vmatpush1.bf16.msra.mxu0 0
        %544 = vmatprep.subr.bf16.mxu0 0
        %545 = vmatpush1.bf16.msra.mxu0 0
        %546 = vmatprep.subr.bf16.mxu0 0
        %547 = vmatpush1.bf16.msra.mxu0 0
        %548 = vmatprep.subr.bf16.mxu0 0
        %549 = vmatpush1.bf16.msra.mxu0 0
        %550 = vmatprep.subr.bf16.mxu0 0
        %551 = vmatpush1.bf16.msra.mxu0 %v385
        %552 = vmatprep.subr.bf16.mxu0 0
        %553 = vmatpush1.bf16.msra.mxu0 %v384
        %554 = vmatprep.subr.bf16.mxu0 0
        %555 = vmatpush2.bf16.msra.mxu0 0
        %556 = vmatprep.subr.bf16.mxu0 0
        %557 = vmatpush2.bf16.msra.mxu0 0
        %558 = vmatprep.subr.bf16.mxu0 0
        %559 = vmatpush2.bf16.msra.mxu0 0
        %560 = vmatprep.subr.bf16.mxu0 0
        %561 = vmatpush2.bf16.msra.mxu0 0
        %562 = vmatprep.subr.bf16.mxu0 0
        %563 = vmatpush2.bf16.msra.mxu0 0
        %564 = vmatprep.subr.bf16.mxu0 0
        %565 = vmatpush2.bf16.msra.mxu0 0
        %566 = vmatprep.subr.bf16.mxu0 0
        %567 = vmatpush2.bf16.msra.mxu0 0
        %568 = vmatprep.subr.bf16.mxu0 0
        %569 = vmatpush2.bf16.msra.mxu0 0
        %570 = vmatprep.mubr.bf16.mxu0 0
        %571 = vmatmul.mubr.bf16.gmra.mxu0 %v527
        %v572 = vpop.f32.mrf.mxu0
        %v573 = vadd.f32 %v476, %v572
        %v574 = vpop.f32.mrf.mxu0
        %v575 = vpop.f32.mrf.mxu0
        %v576 = vadd.f32 %v479, %v575
        %v577 = vpop.f32.mrf.mxu0
        %578 = vmatprep.mubr.bf16.mxu0 0
        %579 = vmatmul.mubr.bf16.gmra.mxu0 %v530
        %v580 = vpop.f32.mrf.mxu0
        %v581 = vadd.f32 %v484, %v580
        %v582 = vpop.f32.mrf.mxu0
        %v583 = vpop.f32.mrf.mxu0
        %v584 = vadd.f32 %v487, %v583
        %v585 = vpop.f32.mrf.mxu0
        %586 = vmatprep.mubr.bf16.mxu0 0
        %587 = vmatmul.mubr.bf16.gmra.mxu0 %v533
        %v588 = vpop.f32.mrf.mxu0
        %v589 = vadd.f32 %v492, %v588
        %v590 = vpop.f32.mrf.mxu0
        %v591 = vpop.f32.mrf.mxu0
        %v592 = vadd.f32 %v495, %v591
        %v593 = vpop.f32.mrf.mxu0
        %594 = vmatprep.mubr.bf16.mxu0 0
        %595 = vmatmul.mubr.bf16.gmra.mxu0 %v536
        %v596 = vpop.f32.mrf.mxu0
        %v597 = vadd.f32 %v500, %v596
        %v598 = vpop.f32.mrf.mxu0
        %v599 = vpop.f32.mrf.mxu0
        %v600 = vadd.f32 %v503, %v599
        %v601 = vpop.f32.mrf.mxu0
        %602 = vdwg.mxu0
        %v603 = vld [vmem:[%s317] sm:$0xff]
        %v604 = vld [vmem:[%s317 + $0x8] sm:$0xff]
        %v605 = vld [vmem:[%s317 + $0x10] sm:$0xff]
        %v606 = vld [vmem:[%s317 + $0x18] sm:$0xff]
        %v607 = vld [vmem:[%s317 + $0x20] sm:$0xff]
        %v608 = vld [vmem:[%s317 + $0x28] sm:$0xff]
        %v609 = vld [vmem:[%s317 + $0x30] sm:$0xff]
        %v610 = vld [vmem:[%s317 + $0x38] sm:$0xff]
        %v611 = vadd.f32 %v573, %v603
        %v612 = vadd.f32 %v576, %v604
        %v613 = vadd.f32 %v581, %v605
        %v614 = vadd.f32 %v584, %v606
        %v615 = vadd.f32 %v589, %v607
        %v616 = vadd.f32 %v592, %v608
        %v617 = vadd.f32 %v597, %v609
        %v618 = vadd.f32 %v600, %v610
        %v619 = vxor.u32 %v611, 2147483648
        %v620 = vxor.u32 %v612, 2147483648
        %v621 = vxor.u32 %v613, 2147483648
        %v622 = vxor.u32 %v614, 2147483648
        %v623 = vmul.f32 %v619, 1.442695
        %v624 = vpow.pop %v623
        %v625 = vmul.f32 %v620, 1.442695
        %v626 = vpow.pop %v625
        %v627 = vmul.f32 %v621, 1.442695
        %v628 = vpow.pop %v627
        %v629 = vmul.f32 %v622, 1.442695
        %v630 = vpow.pop %v629
        %v631 = vadd.f32 %v624, 1.0
        %v632 = vadd.f32 %v626, 1.0
        %v633 = vadd.f32 %v628, 1.0
        %v634 = vadd.f32 %v630, 1.0
        %v635 = vrcp.pop %v631
        %v636 = vmul.f32 1.0, %v635
        %v637 = vrcp.pop %v632
        %v638 = vmul.f32 1.0, %v637
        %v639 = vrcp.pop %v633
        %v640 = vmul.f32 1.0, %v639
        %v641 = vrcp.pop %v634
        %v642 = vmul.f32 1.0, %v641
        %643 = vst [vmem:[%s371] sm:$0xff] %v636
        %644 = vst [vmem:[%s371 + $0x8] sm:$0xff] %v638
        %645 = vst [vmem:[%s371 + $0x10] sm:$0xff] %v640
        %646 = vst [vmem:[%s371 + $0x18] sm:$0xff] %v642
        %v647 = vtanh.pop %v615
        %v648 = vtanh.pop %v616
        %v649 = vtanh.pop %v617
        %v650 = vtanh.pop %v618
        %651 = vst [vmem:[%s378] sm:$0xff] %v647
        %652 = vst [vmem:[%s378 + $0x8] sm:$0xff] %v648
        %653 = vst [vmem:[%s378 + $0x10] sm:$0xff] %v649
        %654 = vst [vmem:[%s378 + $0x18] sm:$0xff] %v650
        %s655 = sand.u32 %s176, 1
        %s656 = scalar_lea.sflag [#allocation4], %s655
        %s657 = sand.u32 %s176, 1
        %s658 = smul.addr %s657, 32
        %s659 = scalar_lea.vmem [#allocation8], %s658
        %s660 = sand.u32 %s204, 1
        %s661 = scalar_lea.sflag [#allocation10], %s660
        %s662 = sand.u32 %s204, 1
        %s663 = smul.addr %s662, 32
        %s664 = scalar_lea.vmem [#allocation9], %s663
        // Predicated region
        $region53: #{tpu_custom_call.1} parent=39 // pred_check
          %p665 = pneg %p186
        $region54: #{tpu_custom_call.1} parent=39 // pred_check_branch
          %667 = sbr.rel (%p665) target = $region56
        $region55: #{tpu_custom_call.1} parent=39 // pred_region
          %s669 = ssub.s32 512, 512
          %670 = vsyncadd %s656, %s669
          %s671 = smul.addr %s34, 8
          %s672 = sadd.s32 %s35, %s671
          %s673 = smul.addr %s672, 128
          %s674 = scalar_lea.hbm %s5, %s673
          %s675 = sshll.u32 %s659, 4
          %s676 = int_to_ptr.vmem [resolvable:$true] %s675
          %681 = dma.vmem_to_hbm [thread:$0]  %s676, 512, %s674, %s656, 128, 256, 8
        $region56: #{tpu_custom_call.1} parent=39 // pred_fallthru
          _
        // Predicated region
        $region57: #{tpu_custom_call.1} parent=39 // pred_check
          %p682 = pneg %p214
        $region58: #{tpu_custom_call.1} parent=39 // pred_check_branch
          %684 = sbr.rel (%p682) target = $region60
        $region59: #{tpu_custom_call.1} parent=39 // pred_region
          %s686 = ssub.s32 512, 512
          %687 = vsyncadd %s661, %s686
          %s688 = smul.addr %s34, 8
          %s689 = sadd.s32 %s35, %s688
          %s690 = smul.addr %s689, 128
          %s691 = scalar_lea.hbm %s6, %s690
          %s692 = sshll.u32 %s664, 4
          %s693 = int_to_ptr.vmem [resolvable:$true] %s692
          %698 = dma.vmem_to_hbm [thread:$0]  %s693, 512, %s691, %s661, 128, 256, 8
        $region60: #{tpu_custom_call.1} parent=39 // pred_fallthru
          _
      $region40: #{tpu_custom_call.1} parent=5 // pred_fallthru
        _
      %p699 = scmp.le.s32.totalorder 2, %s25
      // Predicated region
      $region61: #{tpu_custom_call.1} parent=5 // pred_check
        %p700 = pneg %p699
      $region62: #{tpu_custom_call.1} parent=5 // pred_check_branch
        %702 = sbr.rel (%p700) target = $region64
      $region63: #{tpu_custom_call.1} parent=5 // pred_region
        %s703 = ssub.s32 %s25, 2
        // Predicated region
        $region65: #{tpu_custom_call.1} parent=63 // pred_check
          %p704 = pneg %p192
        $region66: #{tpu_custom_call.1} parent=63 // pred_check_branch
          %706 = sbr.rel (%p704) target = $region68
        $region67: #{tpu_custom_call.1} parent=63 // pred_region
          %s707 = sand.u32 %s177, 1
          %s708 = scalar_lea.sflag [#allocation4], %s707
          %s709 = sand.u32 %s177, 1
          %s710 = smul.addr %s709, 32
          %s711 = scalar_lea.vmem [#allocation8], %s710
          %712 = dma.done %s708, 512
        $region68: #{tpu_custom_call.1} parent=63 // pred_fallthru
          _
        // Predicated region
        $region69: #{tpu_custom_call.1} parent=63 // pred_check
          %p713 = pneg %p220
        $region70: #{tpu_custom_call.1} parent=63 // pred_check_branch
          %715 = sbr.rel (%p713) target = $region72
        $region71: #{tpu_custom_call.1} parent=63 // pred_region
          %s716 = sand.u32 %s205, 1
          %s717 = scalar_lea.sflag [#allocation10], %s716
          %s718 = sand.u32 %s205, 1
          %s719 = smul.addr %s718, 32
          %s720 = scalar_lea.vmem [#allocation9], %s719
          %721 = dma.done %s717, 512
        $region72: #{tpu_custom_call.1} parent=63 // pred_fallthru
          _
      $region64: #{tpu_custom_call.1} parent=5 // pred_fallthru
        _
    $region6: #{tpu_custom_call.1} parent=1 // loop_footer
      %s29 = sadd.s32 1, %s25
    $region7: #{tpu_custom_call.1} parent=1 // loop_footer_branch
      %24 = sbr.rel target = $region3
    $region8: #{tpu_custom_call.1} parent=1 // loop_exit
      _
    %722 = vsyncpa [#allocation3], 1
    %s723 = scalar_lea.sflag [#allocation3], 1
    %724 = vsyncpa %s723, 1
    %725 = vsyncpa [#allocation6], 1
    %s726 = scalar_lea.sflag [#allocation6], 1
    %727 = vsyncpa %s726, 1
    %728 = vsyncpa [#allocation4], 1
    %s729 = scalar_lea.sflag [#allocation4], 1
    %730 = vsyncpa %s729, 1
    %731 = vsyncpa [#allocation10], 1
    %s732 = scalar_lea.sflag [#allocation10], 1
    %733 = vsyncpa %s732, 1

</llo_original>
